<compile_context>
chip_gen: v7x
topology: tpu7x:2x2x1
jax: 0.10.0
libtpu: 0.0.40
codegen_flags: <defaults>
</compile_context>

<pallas_src>
import functools

import jax
import jax.numpy as jnp
from jax.experimental import pallas as pl
from jax.experimental.pallas import tpu as pltpu


# ----------------------------- Pallas kernel ---------------------------------


def trans_head_kernel(x_ref, w1_ref, b1_ref, w2_ref, b2_ref, g_ref, *,
                      n_valid, tn, tiles_per_split, has_padding):
    """One (batch, split, seq-tile) grid step.

    x_ref : (1, TN, F)      compute dtype (bf16 on v6e/v7x, f32 on v5e)
    w1_ref: (F, 1024)       compute dtype   b1_ref: (1, 1024) compute dtype
    w2_ref: (1024, 256)     bf16            b2_ref: (1, 256)  f32
    g_ref : (1, 1, 1, 256)  f32 -- resident across the seq-tile axis (running max)
    """
    s = pl.program_id(1)
    n = pl.program_id(2)

    # ReLU guarantees h2 >= 0, so a 0-initialized running max (and 0-masked
    # pad rows) gives exactly torch.max over the valid positions.
    @pl.when(n == 0)
    def _():
        g_ref[...] = jnp.zeros_like(g_ref)

    x = x_ref[0]                                           # (TN, F)
    f_dim = x.shape[1]

    # conv1 (1x1, folded bn1) as an F-term VPU broadcast-FMA.  K == F is tiny,
    # so an MXU matmul would pad to full systolic depth and cost as much MXU
    # time as conv2; on the VALU slot it overlaps with conv2's MXU work.
    h1 = x[:, 0:1] * w1_ref[0:1, :] + b1_ref[...]
    for f in range(1, f_dim):
        h1 = h1 + x[:, f:f + 1] * w1_ref[f:f + 1, :]
    # relu fused with the cast feeding the MXU (no-op cast on the bf16 path).
    h1 = jnp.maximum(h1, 0.0).astype(jnp.bfloat16)         # (TN, 1024) bf16

    # conv2 (1x1, folded bn2) on the MXU with f32 accumulation, then bias+relu.
    h2 = jnp.dot(h1, w2_ref[...], preferred_element_type=jnp.float32)
    h2 = jnp.maximum(h2 + b2_ref[...], 0.0)                # (TN, 256) f32

    def update(h2_val):
        g_ref[0, 0] = jnp.maximum(g_ref[0, 0],
                                  jnp.max(h2_val, axis=0, keepdims=True))

    if has_padding:
        # Only tiles whose row range extends past N contain pad rows; gate the
        # iota/compare/select to those tiles.
        tile_start = (s * tiles_per_split + n) * tn
        is_partial = tile_start + tn > n_valid

        @pl.when(is_partial)
        def _():
            row = jax.lax.broadcasted_iota(jnp.int32, (tn, 1), 0)
            valid = (tile_start + row) < n_valid
            update(jnp.where(valid, h2, 0.0))

        @pl.when(jnp.logical_not(is_partial))
        def _():
            update(h2)
    else:
        update(h2)


# ------------------------------ JAX wrapper ----------------------------------


def fold_bn(w, b, gamma, beta, mean, var, eps=1e-5):
    """Fold eval-mode BatchNorm1d into a preceding 1x1 conv (w: (Cout, Cin))."""
    scale = gamma / jnp.sqrt(var + eps)
    w_f = w * scale[:, None]
    b_f = (b - mean) * scale + beta
    return w_f, b_f


@functools.partial(jax.jit,
                   static_argnames=("tn", "n_splits", "vmem_limit", "use_bf16"))
def _trans_head_jit(x_ncl, params, *, tn, n_splits, vmem_limit, use_bf16):
    B, F, N = x_ncl.shape
    cdtype = jnp.bfloat16 if use_bf16 else jnp.float32

    # Fold BN into convs (glue, plain JAX).
    w1, b1 = fold_bn(params["w1"], params["b1"], params["g1"], params["be1"],
                     params["m1"], params["v1"])
    w2, b2 = fold_bn(params["w2"], params["b2"], params["g2"], params["be2"],
                     params["m2"], params["v2"])
    w3, b3 = fold_bn(params["w3"], params["b3"], params["g3"], params["be3"],
                     params["m3"], params["v3"])
    w4, b4 = params["w4"], params["b4"]

    num_tiles = -(-N // tn)
    n_splits = min(n_splits, num_tiles)
    tiles_per_split = -(-num_tiles // n_splits)
    n_pad = n_splits * tiles_per_split * tn

    # NCL -> NLC, pad the sequence dim, cast to the compute dtype.
    x_nlc = jnp.transpose(x_ncl, (0, 2, 1))
    x_nlc = jnp.pad(x_nlc, ((0, 0), (0, n_pad - N), (0, 0))).astype(cdtype)

    w1t = w1.T.astype(cdtype)                     # (F, 1024)
    b1r = b1[None, :].astype(cdtype)              # (1, 1024)
    w2t = w2.T.astype(jnp.bfloat16)               # (1024, 256)
    b2r = b2[None, :].astype(jnp.float32)         # (1, 256)

    kernel = functools.partial(
        trans_head_kernel, n_valid=N, tn=tn,
        tiles_per_split=tiles_per_split, has_padding=(n_pad != N))

    g = pl.pallas_call(
        kernel,
        out_shape=jax.ShapeDtypeStruct((B, n_splits, 1, 256), jnp.float32),
        grid_spec=pltpu.PrefetchScalarGridSpec(
            num_scalar_prefetch=0,
            grid=(B, n_splits, tiles_per_split),
            in_specs=[
                pl.BlockSpec((1, tn, F),
                             lambda b, s, n: (b, s * tiles_per_split + n, 0)),
                pl.BlockSpec(w1t.shape, lambda b, s, n: (0, 0)),   # w1 (whole)
                pl.BlockSpec(b1r.shape, lambda b, s, n: (0, 0)),   # b1
                pl.BlockSpec(w2t.shape, lambda b, s, n: (0, 0)),   # w2 (whole)
                pl.BlockSpec(b2r.shape, lambda b, s, n: (0, 0)),   # b2
            ],
            # Same output block for every n -> resident accumulator across the
            # seq-tile axis; distinct per (batch, split) so both axes can be
            # parallel across cores.
            out_specs=pl.BlockSpec((1, 1, 1, 256),
                                   lambda b, s, n: (b, s, 0, 0)),
        ),
        compiler_params=pltpu.CompilerParams(
            dimension_semantics=("parallel", "parallel", "arbitrary"),
            vmem_limit_bytes=vmem_limit,
        ),
    )(x_nlc, w1t, b1r, w2t, b2r)

    # Finish the cross-split max (no-op reduction when n_splits == 1).
    g = jnp.max(g[:, :, 0, :], axis=1)            # (B, 256)

    # Tail (conv3 + bn3 + relu, dropout=identity in eval, conv4) hoisted to XLA:
    # one (B,256)x(256,256) matmul instead of B MXU-starved M=1 matmuls.
    h3 = jnp.maximum(g @ w3.T + b3[None, :], 0.0)
    # TODO(synk): training-mode dropout (p=0.2) not implemented (eval identity).
    y = h3 @ w4.T + b4[None, :]
    return y                                      # (B, k)


def _chip_config():
    """Generation-aware compute dtype / tile cap / vmem limit / core split."""
    kind = ""
    try:
        kind = jax.devices()[0].device_kind.lower()
    except Exception:
        pass
    if "v5" in kind:
        # v5e: no bf16 VALU -> f32 VPU conv1; keep tiles a bit smaller.
        return {"use_bf16": False, "tn_cap": 1024,
                "vmem_limit": 48 * 1024 * 1024, "n_splits": 1}
    if "v7" in kind:
        # v7x: only 64 MiB VMEM; 2 TensorCores -> split the sequence dim so
        # both cores get work even when B is small/odd.
        return {"use_bf16": True, "tn_cap": 2048,
                "vmem_limit": 44 * 1024 * 1024, "n_splits": 2}
    # v6e / default.
    return {"use_bf16": True, "tn_cap": 2048,
            "vmem_limit": 64 * 1024 * 1024, "n_splits": 1}


def trans_head_forward(x_ncl, params, tn=None):
    """x_ncl: (B, F, N) float32 (PyTorch NCL layout). Returns (B, k)."""
    cfg = _chip_config()
    N = x_ncl.shape[2]
    if tn is None:
        per_split = -(-N // cfg["n_splits"])
        tn = per_split if per_split <= cfg["tn_cap"] else cfg["tn_cap"]
        tn = max(8, -(-tn // 8) * 8)              # multiple of 8 sublanes
    return _trans_head_jit(x_ncl, params, tn=int(tn),
                           n_splits=cfg["n_splits"],
                           vmem_limit=cfg["vmem_limit"],
                           use_bf16=cfg["use_bf16"])


# --------------------------- Deterministic init -------------------------------


def init_params(key, in_feat_dim, out_dim):
    dims = [(1024, in_feat_dim), (256, 1024), (256, 256), (out_dim, 256)]
    params = {}
    keys = jax.random.split(key, 8)
    for i, (co, ci) in enumerate(dims, start=1):
        bound = 1.0 / jnp.sqrt(ci)
        params[f"w{i}"] = jax.random.uniform(
            keys[2 * (i - 1)], (co, ci), jnp.float32, -bound, bound)
        params[f"b{i}"] = jax.random.uniform(
            keys[2 * (i - 1) + 1], (co,), jnp.float32, -bound, bound)
    # BatchNorm params (eval mode): non-trivial deterministic values.
    for i, c in [(1, 1024), (2, 256), (3, 256)]:
        params[f"g{i}"] = 1.0 + 0.01 * jnp.arange(c, dtype=jnp.float32) / c
        params[f"be{i}"] = 0.05 * jnp.sin(jnp.arange(c, dtype=jnp.float32))
        params[f"m{i}"] = 0.02 * jnp.cos(jnp.arange(c, dtype=jnp.float32))
        params[f"v{i}"] = 1.0 + 0.1 * (jnp.arange(c, dtype=jnp.float32) % 7) / 7
    return params


def reference_forward(x_ncl, params):
    """Pure-JAX f32 reference mirroring the PyTorch eval-mode forward."""
    def conv_bn_relu(h, i):
        w, b = fold_bn(params[f"w{i}"], params[f"b{i}"], params[f"g{i}"],
                       params[f"be{i}"], params[f"m{i}"], params[f"v{i}"])
        y = jnp.einsum("oc,bcn->bon", w, h) + b[None, :, None]
        return jnp.maximum(y, 0.0)

    h = conv_bn_relu(x_ncl, 1)
    h = conv_bn_relu(h, 2)
    h = jnp.max(h, axis=2, keepdims=True)
    h = conv_bn_relu(h, 3)
    y = jnp.einsum("oc,bcn->bon", params["w4"], h) + params["b4"][None, :, None]
    return y[:, :, 0]


# ----------------------------------- main -------------------------------------


if __name__ == "__main__":
    B, F, N, K = 2, 4, 20, 3         # batch, in_feat_dim, seq length, out_dim

    key = jax.random.PRNGKey(0)
    k_x, k_p = jax.random.split(key)
    x = jax.random.normal(k_x, (B, F, N), dtype=jnp.float32)   # NCL like PyTorch
    params = init_params(k_p, F, K)

    y_ref = reference_forward(x, params)

    # Multi-tile path (tn=8 -> 3 seq tiles, last tile masked: N=20 -> pad 24).
    y_tiled = jax.block_until_ready(trans_head_forward(x, params, tn=8))
    assert y_tiled.shape == (B, K), y_tiled.shape
    assert jnp.allclose(y_tiled, y_ref, atol=5e-2, rtol=5e-2), (y_tiled, y_ref)

    # Default (generation-aware tile) path.
    y = jax.block_until_ready(trans_head_forward(x, params))
    assert y.shape == (B, K), y.shape
    assert jnp.allclose(y, y_ref, atol=5e-2, rtol=5e-2), (y, y_ref)

    print("KERNEL_OK")
</pallas_src>

<mosaic_0001>
module attributes {stable_mosaic.version = 11 : i64} {
  func.func @trans_head_kernel(%arg0: i32, %arg1: i32, %arg2: i32, %arg3: memref<1x8x4xbf16, #tpu.memory_space<vmem>>, %arg4: memref<4x1024xbf16, #tpu.memory_space<vmem>>, %arg5: memref<1x1024xbf16, #tpu.memory_space<vmem>>, %arg6: memref<1024x256xbf16, #tpu.memory_space<vmem>>, %arg7: memref<1x256xf32, #tpu.memory_space<vmem>>, %arg8: memref<1x1x1x256xf32, #tpu.memory_space<vmem>>) attributes {dimension_semantics = [#tpu.dimension_semantics<parallel>, #tpu.dimension_semantics<parallel>, #tpu.dimension_semantics<arbitrary>], iteration_bounds = array<i64: 2, 1, 3>, scalar_prefetch = 0 : i64, scratch_operands = 0 : i64, tpu.core_type = #tpu.core_type<tc>, window_params = [{transform_indices = @transform_0, window_bounds = array<i64: 1, 8, 4>}, {pipeline_mode = #tpu.pipeline_mode<synchronous>, transform_indices = @transform_1, window_bounds = array<i64: 4, 1024>}, {pipeline_mode = #tpu.pipeline_mode<synchronous>, transform_indices = @transform_2, window_bounds = array<i64: 1, 1024>}, {pipeline_mode = #tpu.pipeline_mode<synchronous>, transform_indices = @transform_3, window_bounds = array<i64: 1024, 256>}, {pipeline_mode = #tpu.pipeline_mode<synchronous>, transform_indices = @transform_4, window_bounds = array<i64: 1, 256>}, {transform_indices = @transform_5, window_bounds = array<i64: 1, 1, 1, 256>}]} {
    %c0_i32 = arith.constant 0 : i32
    %0 = arith.cmpi eq, %arg2, %c0_i32 : i32
    %1 = arith.extui %0 : i1 to i32
    %c0_i32_0 = arith.constant 0 : i32
    %2 = arith.cmpi ne, %1, %c0_i32_0 : i32
    scf.if %2 {
      %cst_19 = arith.constant 0.000000e+00 : f32
      %50 = vector.broadcast %cst_19 : f32 to vector<1x1x1x256xf32>
      %c0_20 = arith.constant 0 : index
      %c0_21 = arith.constant 0 : index
      %c0_22 = arith.constant 0 : index
      %c0_23 = arith.constant 0 : index
      %51 = vector.load %arg8[%c0_20, %c0_21, %c0_22, %c0_23] : memref<1x1x1x256xf32, #tpu.memory_space<vmem>>, vector<1x1x1x256xf32>
      tpu.vector_store %arg8[%c0_20, %c0_21, %c0_22, %c0_23], %50 {strides = array<i32>} : memref<1x1x1x256xf32, #tpu.memory_space<vmem>>, vector<1x1x1x256xf32>,
    } else {
    }
    %c0 = arith.constant 0 : index
    %c0_1 = arith.constant 0 : index
    %c0_2 = arith.constant 0 : index
    %3 = vector.load %arg3[%c0, %c0_1, %c0_2] : memref<1x8x4xbf16, #tpu.memory_space<vmem>>, vector<1x8x4xbf16>
    %4 = vector.shape_cast %3 : vector<1x8x4xbf16> to vector<8x4xbf16>
    %5 = vector.extract_strided_slice %4 {offsets = [0, 0], sizes = [8, 1], strides = [1, 1]} : vector<8x4xbf16> to vector<8x1xbf16>
    %c0_3 = arith.constant 0 : index
    %c0_4 = arith.constant 0 : index
    %6 = vector.load %arg4[%c0_3, %c0_4] : memref<4x1024xbf16, #tpu.memory_space<vmem>>, vector<1x1024xbf16>
    %7 = vector.broadcast %5 : vector<8x1xbf16> to vector<8x1024xbf16>
    %8 = vector.broadcast %6 : vector<1x1024xbf16> to vector<8x1024xbf16>
    %9 = arith.mulf %7, %8 : vector<8x1024xbf16>
    %c0_5 = arith.constant 0 : index
    %c0_6 = arith.constant 0 : index
    %10 = vector.load %arg5[%c0_5, %c0_6] : memref<1x1024xbf16, #tpu.memory_space<vmem>>, vector<1x1024xbf16>
    %11 = vector.broadcast %10 : vector<1x1024xbf16> to vector<8x1024xbf16>
    %12 = arith.addf %9, %11 : vector<8x1024xbf16>
    %13 = vector.extract_strided_slice %4 {offsets = [0, 1], sizes = [8, 1], strides = [1, 1]} : vector<8x4xbf16> to vector<8x1xbf16>
    %c1 = arith.constant 1 : index
    %c0_7 = arith.constant 0 : index
    %14 = vector.load %arg4[%c1, %c0_7] : memref<4x1024xbf16, #tpu.memory_space<vmem>>, vector<1x1024xbf16>
    %15 = vector.broadcast %13 : vector<8x1xbf16> to vector<8x1024xbf16>
    %16 = vector.broadcast %14 : vector<1x1024xbf16> to vector<8x1024xbf16>
    %17 = arith.mulf %15, %16 : vector<8x1024xbf16>
    %18 = arith.addf %12, %17 : vector<8x1024xbf16>
    %19 = vector.extract_strided_slice %4 {offsets = [0, 2], sizes = [8, 1], strides = [1, 1]} : vector<8x4xbf16> to vector<8x1xbf16>
    %c2 = arith.constant 2 : index
    %c0_8 = arith.constant 0 : index
    %20 = vector.load %arg4[%c2, %c0_8] : memref<4x1024xbf16, #tpu.memory_space<vmem>>, vector<1x1024xbf16>
    %21 = vector.broadcast %19 : vector<8x1xbf16> to vector<8x1024xbf16>
    %22 = vector.broadcast %20 : vector<1x1024xbf16> to vector<8x1024xbf16>
    %23 = arith.mulf %21, %22 : vector<8x1024xbf16>
    %24 = arith.addf %18, %23 : vector<8x1024xbf16>
    %25 = vector.extract_strided_slice %4 {offsets = [0, 3], sizes = [8, 1], strides = [1, 1]} : vector<8x4xbf16> to vector<8x1xbf16>
    %c3 = arith.constant 3 : index
    %c0_9 = arith.constant 0 : index
    %26 = vector.load %arg4[%c3, %c0_9] : memref<4x1024xbf16, #tpu.memory_space<vmem>>, vector<1x1024xbf16>
    %27 = vector.broadcast %25 : vector<8x1xbf16> to vector<8x1024xbf16>
    %28 = vector.broadcast %26 : vector<1x1024xbf16> to vector<8x1024xbf16>
    %29 = arith.mulf %27, %28 : vector<8x1024xbf16>
    %30 = arith.addf %24, %29 : vector<8x1024xbf16>
    %cst = arith.constant 0.000000e+00 : bf16
    %31 = vector.broadcast %cst : bf16 to vector<8x1024xbf16>
    %32 = arith.maximumf %30, %31 : vector<8x1024xbf16>
    %c0_10 = arith.constant 0 : index
    %c0_11 = arith.constant 0 : index
    %33 = vector.load %arg6[%c0_10, %c0_11] : memref<1024x256xbf16, #tpu.memory_space<vmem>>, vector<1024x256xbf16>
    %cst_12 = arith.constant dense<0.000000e+00> : vector<8x256xf32>
    %34 = tpu.matmul %32, %33, %cst_12 {dimension_numbers = #tpu.dot_dimension_numbers<[1], [0], [0], [1], [0, 0, 1, 1], [], []>} : vector<8x1024xbf16>, vector<1024x256xbf16>, vector<8x256xf32> -> vector<8x256xf32>
    %c0_13 = arith.constant 0 : index
    %c0_14 = arith.constant 0 : index
    %35 = vector.load %arg7[%c0_13, %c0_14] : memref<1x256xf32, #tpu.memory_space<vmem>>, vector<1x256xf32>
    %36 = vector.broadcast %35 : vector<1x256xf32> to vector<8x256xf32>
    %37 = arith.addf %34, %36 : vector<8x256xf32>
    %cst_15 = arith.constant 0.000000e+00 : f32
    %38 = vector.broadcast %cst_15 : f32 to vector<8x256xf32>
    %39 = arith.maximumf %37, %38 : vector<8x256xf32>
    %c3_i32 = arith.constant 3 : i32
    %40 = arith.muli %arg1, %c3_i32 : i32
    %41 = arith.addi %40, %arg2 : i32
    %c8_i32 = arith.constant 8 : i32
    %42 = arith.muli %41, %c8_i32 : i32
    %c8_i32_16 = arith.constant 8 : i32
    %43 = arith.addi %42, %c8_i32_16 : i32
    %c20_i32 = arith.constant 20 : i32
    %44 = arith.cmpi sgt, %43, %c20_i32 : i32
    %45 = arith.extui %44 : i1 to i32
    %c0_i32_17 = arith.constant 0 : i32
    %46 = arith.cmpi ne, %45, %c0_i32_17 : i32
    scf.if %46 {
      %50 = tpu.iota {dimensions = array<i32: 0>} : vector<8x1xi32>
      %51 = vector.broadcast %42 : i32 to vector<8x1xi32>
      %52 = arith.addi %51, %50 : vector<8x1xi32>
      %c20_i32_19 = arith.constant 20 : i32
      %53 = vector.broadcast %c20_i32_19 : i32 to vector<8x1xi32>
      %54 = arith.cmpi slt, %52, %53 : vector<8x1xi32>
      %cst_20 = arith.constant 0.000000e+00 : f32
      %55 = vector.shape_cast %54 : vector<8x1xi1> to vector<8x1xi1>
      %56 = vector.broadcast %55 : vector<8x1xi1> to vector<8x256xi1>
      %57 = vector.broadcast %cst_20 : f32 to vector<8x256xf32>
      %58 = arith.select %56, %39, %57 : vector<8x256xi1>, vector<8x256xf32>
      %c0_21 = arith.constant 0 : index
      %c0_22 = arith.constant 0 : index
      %c0_23 = arith.constant 0 : index
      %c0_24 = arith.constant 0 : index
      %59 = vector.load %arg8[%c0_21, %c0_22, %c0_23, %c0_24] : memref<1x1x1x256xf32, #tpu.memory_space<vmem>>, vector<1x1x1x256xf32>
      %60 = vector.shape_cast %59 : vector<1x1x1x256xf32> to vector<1x256xf32>
      %cst_25 = arith.constant dense<0xFF800000> : vector<256xf32>
      %61 = vector.multi_reduction <maximumf>, %58, %cst_25 [0] : vector<8x256xf32> to vector<256xf32>
      %62 = vector.shape_cast %61 : vector<256xf32> to vector<1x256xf32>
      %63 = arith.maximumf %60, %62 : vector<1x256xf32>
      %c0_26 = arith.constant 0 : index
      %c0_27 = arith.constant 0 : index
      %c0_28 = arith.constant 0 : index
      %c0_29 = arith.constant 0 : index
      %64 = vector.load %arg8[%c0_26, %c0_27, %c0_28, %c0_29] : memref<1x1x1x256xf32, #tpu.memory_space<vmem>>, vector<1x1x1x256xf32>
      %65 = vector.shape_cast %64 : vector<1x1x1x256xf32> to vector<1x256xf32>
      %66 = vector.shape_cast %63 : vector<1x256xf32> to vector<1x1x1x256xf32>
      tpu.vector_store %arg8[%c0_26, %c0_27, %c0_28, %c0_29], %66 {strides = array<i32>} : memref<1x1x1x256xf32, #tpu.memory_space<vmem>>, vector<1x1x1x256xf32>,
    } else {
    }
    %true = arith.constant true
    %47 = arith.xori %44, %true : i1
    %48 = arith.extui %47 : i1 to i32
    %c0_i32_18 = arith.constant 0 : i32
    %49 = arith.cmpi ne, %48, %c0_i32_18 : i32
    scf.if %49 {
      %c0_19 = arith.constant 0 : index
      %c0_20 = arith.constant 0 : index
      %c0_21 = arith.constant 0 : index
      %c0_22 = arith.constant 0 : index
      %50 = vector.load %arg8[%c0_19, %c0_20, %c0_21, %c0_22] : memref<1x1x1x256xf32, #tpu.memory_space<vmem>>, vector<1x1x1x256xf32>
      %51 = vector.shape_cast %50 : vector<1x1x1x256xf32> to vector<1x256xf32>
      %cst_23 = arith.constant dense<0xFF800000> : vector<256xf32>
      %52 = vector.multi_reduction <maximumf>, %39, %cst_23 [0] : vector<8x256xf32> to vector<256xf32>
      %53 = vector.shape_cast %52 : vector<256xf32> to vector<1x256xf32>
      %54 = arith.maximumf %51, %53 : vector<1x256xf32>
      %c0_24 = arith.constant 0 : index
      %c0_25 = arith.constant 0 : index
      %c0_26 = arith.constant 0 : index
      %c0_27 = arith.constant 0 : index
      %55 = vector.load %arg8[%c0_24, %c0_25, %c0_26, %c0_27] : memref<1x1x1x256xf32, #tpu.memory_space<vmem>>, vector<1x1x1x256xf32>
      %56 = vector.shape_cast %55 : vector<1x1x1x256xf32> to vector<1x256xf32>
      %57 = vector.shape_cast %54 : vector<1x256xf32> to vector<1x1x1x256xf32>
      tpu.vector_store %arg8[%c0_24, %c0_25, %c0_26, %c0_27], %57 {strides = array<i32>} : memref<1x1x1x256xf32, #tpu.memory_space<vmem>>, vector<1x1x1x256xf32>,
    } else {
    }
    return
  }
  func.func @transform_0(%arg0: i32, %arg1: i32, %arg2: i32) -> (i32, i32, i32) {
    %c3_i32 = arith.constant 3 : i32
    %0 = arith.muli %arg1, %c3_i32 : i32
    %1 = arith.addi %0, %arg2 : i32
    %c0_i32 = arith.constant 0 : i32
    %c0_i32_0 = arith.constant 0 : i32
    return %arg0, %1, %c0_i32 : i32, i32, i32
  }
  func.func @transform_1(%arg0: i32, %arg1: i32, %arg2: i32) -> (i32, i32) {
    %c0_i32 = arith.constant 0 : i32
    %c0_i32_0 = arith.constant 0 : i32
    %c0_i32_1 = arith.constant 0 : i32
    return %c0_i32, %c0_i32_0 : i32, i32
  }
  func.func @transform_2(%arg0: i32, %arg1: i32, %arg2: i32) -> (i32, i32) {
    %c0_i32 = arith.constant 0 : i32
    %c0_i32_0 = arith.constant 0 : i32
    %c0_i32_1 = arith.constant 0 : i32
    return %c0_i32, %c0_i32_0 : i32, i32
  }
  func.func @transform_3(%arg0: i32, %arg1: i32, %arg2: i32) -> (i32, i32) {
    %c0_i32 = arith.constant 0 : i32
    %c0_i32_0 = arith.constant 0 : i32
    %c0_i32_1 = arith.constant 0 : i32
    return %c0_i32, %c0_i32_0 : i32, i32
  }
  func.func @transform_4(%arg0: i32, %arg1: i32, %arg2: i32) -> (i32, i32) {
    %c0_i32 = arith.constant 0 : i32
    %c0_i32_0 = arith.constant 0 : i32
    %c0_i32_1 = arith.constant 0 : i32
    return %c0_i32, %c0_i32_0 : i32, i32
  }
  func.func @transform_5(%arg0: i32, %arg1: i32, %arg2: i32) -> (i32, i32, i32, i32) {
    %c0_i32 = arith.constant 0 : i32
    %c0_i32_0 = arith.constant 0 : i32
    %c0_i32_1 = arith.constant 0 : i32
    return %arg0, %arg1, %c0_i32, %c0_i32_0 : i32, i32, i32, i32
  }
}

</mosaic_0001>

<llo_original>
// kernel: _trans_head_jit.1
$region0: #{_trans_head_jit.1}
  #allocation0 [shape = 'u32[]', space=smem, size = 0x4, offset = 0x4, fixed_abs, tag = 'smem constant byte address 0x4 - core index']
  #allocation1 [shape = 'u32[144,128]{1,0:T(1,128)}', space=vmem, size = 0x12000, scoped, tag = 'internal scratch']
  %s0 = inlined_call_operand.hbm [shape: bf16[2,24,4], index: 0, kind: input, shape index: {}]
  %s1 = inlined_call_operand.hbm [shape: bf16[4,1024], index: 1, kind: input, shape index: {}]
  %s2 = inlined_call_operand.hbm [shape: bf16[1,1024], index: 2, kind: input, shape index: {}]
  %s3 = inlined_call_operand.hbm [shape: bf16[1024,256], index: 3, kind: input, shape index: {}]
  %s4 = inlined_call_operand.hbm [shape: f32[1,256], index: 4, kind: input, shape index: {}]
  %s5 = inlined_call_operand.hbm [shape: f32[2,1,1,256], index: 5, kind: output, shape index: {}]
  %s6 = sld [smem:[#allocation0]]
  $region85: #{_trans_head_jit.1} parent=0
    _
  %s8 = ssub.s32 1, %s6
  %s9 = scalar_select 0, %s8, %s6
  $region1: #{_trans_head_jit.1} parent=0
    #allocation2 [shape = 'u8[4096]{0}', space=vmem, size = 0x1000, scoped, tag = 'input window, operand 0']
    #allocation3 [shape = 's32[2]{0}', space=sflag, size = 0x8, scoped, tag = 'scoped memory for _trans_head_jit.1']
    #allocation4 [shape = 's32[2]{0}', space=sflag, size = 0x8, scoped, tag = 'scoped memory for _trans_head_jit.1']
    #allocation5 [shape = 'u8[8192]{0}', space=vmem, size = 0x2000, scoped, tag = 'input window, operand 1, single buffered']
    #allocation6 [shape = 's32[1]{0}', space=sflag, size = 0x4, scoped, tag = 'scoped memory for _trans_head_jit.1']
    #allocation7 [shape = 'u8[4096]{0}', space=vmem, size = 0x1000, scoped, tag = 'input window, operand 2, single buffered']
    #allocation8 [shape = 'u8[524288]{0}', space=vmem, size = 0x80000, scoped, tag = 'input window, operand 3, single buffered']
    #allocation9 [shape = 's32[1]{0}', space=sflag, size = 0x4, scoped, tag = 'scoped memory for _trans_head_jit.1']
    #allocation10 [shape = 'u8[1024]{0}', space=vmem, size = 0x400, scoped, tag = 'input window, operand 4, single buffered']
    #allocation11 [shape = 'u8[2048]{0}', space=vmem, size = 0x800, scoped, tag = 'output window, operand 0']
    %10 = vsyncpa [#allocation3], 0
    %s11 = scalar_lea.sflag [#allocation3], 1
    %12 = vsyncpa %s11, 0
    %13 = vsyncpa [#allocation6], 0
    %14 = vsyncpa [#allocation9], 0
    %15 = vsyncpa [#allocation4], 0
    %s16 = scalar_lea.sflag [#allocation4], 1
    %17 = vsyncpa %s16, 0
    loop: start=0, step=1, limit=8
    $region2: #{_trans_head_jit.1} parent=1 // loop_pre_header
      _
    $region3: #{_trans_head_jit.1} parent=1 // loop_header
      %s19 = sphi 0, %s23
      %p20 = scmp.ge.s32.totalorder %s19, 8
      %s26 = sphi 0, %s45
      %s27 = sphi 0, %s41
      %s28 = sphi 0, %s37
      %s29 = sphi 0, %s26
      %s30 = sphi 0, %s27
      %s31 = sphi 0, %s28
      %s32 = sphi 0, %s29
      %s33 = sphi 0, %s30
      %s34 = sphi 0, %s31
      %s54 = sphi 0, %s56
      %s57 = sphi 0, %s54
      %s58 = sphi 0, %s57
      %s74 = sphi 0, %s58
      %s78 = sphi 0, %s78
      %s80 = sphi 0, %s78
      %s81 = sphi 0, %s80
      %s95 = sphi 0, %s81
      %s99 = sphi 0, %s99
      %s101 = sphi 0, %s99
      %s102 = sphi 0, %s101
      %s116 = sphi 0, %s102
      %s120 = sphi 0, %s120
      %s122 = sphi 0, %s120
      %s123 = sphi 0, %s122
      %s137 = sphi 0, %s123
      %s141 = sphi 0, %s141
      %s143 = sphi 0, %s141
      %s144 = sphi 0, %s143
      %s158 = sphi 0, %s144
      %s166 = sphi 0, %s168
      %s169 = sphi 0, %s166
      %s170 = sphi 0, %s169
      %s186 = sphi 0, %s170
    $region4: #{_trans_head_jit.1} parent=1 // loop_header_branch
      %22 = sbr.rel (%p20) target = $region8
    $region5: #{_trans_head_jit.1} parent=1 // loop_body
      %s24 = ssub.s32 %s19, 1
      %s25 = ssub.s32 %s19, 2
      %s35 = sadd.s32 1, %s28
      %p36 = scmp.ge.s32.totalorder %s35, 3
      %s37 = scalar_select %p36, 0, %s35
      %s38 = sadd.s32 1, %s27
      %s39 = scalar_select %p36, %s38, %s27
      %p40 = scmp.ge.s32.totalorder %s39, 1
      %s41 = scalar_select %p40, 0, %s39
      %s42 = sadd.s32 1, %s26
      %s43 = scalar_select %p40, %s42, %s26
      %p44 = scmp.ge.s32.totalorder %s43, 2
      %s45 = scalar_select %p44, 0, %s43
      %s46 = smul.u32 %s27, 3
      %s47 = sadd.s32 %s46, %s28
      %s48 = smul.u32 %s41, 3
      %s49 = sadd.s32 %s48, %s37
      %s50 = ssub.s32 %s26, %s45
      %s51 = ssub.s32 %s47, %s49
      %s52 = sor.u32 %s50, %s51
      %p53 = scmp.eq.s32.totalorder %s52, 0
      %s55 = sadd.s32 %s54, 1
      %s56 = scalar_select %p53, %s54, %s55
      %p59 = pneg %p53
      %p60 = scmp.eq.s32.totalorder %s19, 5
      %p61 = por %p59, %p60
      %p62 = scmp.ne.s32.totalorder %s54, %s57
      %p63 = scmp.eq.s32.totalorder %s19, 0
      %p64 = por %p62, %p63
      %p65 = scmp.ne.s32.totalorder %s54, %s57
      %p66 = scmp.eq.s32.totalorder %s24, 5
      %p67 = por %p65, %p66
      %p68 = scmp.ne.s32.totalorder %s57, %s58
      %p69 = scmp.eq.s32.totalorder %s24, 0
      %p70 = por %p68, %p69
      %p71 = scmp.ne.s32.totalorder %s57, %s58
      %p72 = scmp.eq.s32.totalorder %s25, 5
      %p73 = por %p71, %p72
      %p75 = scmp.ne.s32.totalorder %s58, %s74
      %p76 = scmp.eq.s32.totalorder %s25, 0
      %p77 = por %p75, %p76
      %s79 = sadd.s32 %s78, 1
      %p82 = scmp.eq.s32.totalorder %s19, 5
      %p83 = scmp.ne.s32.totalorder %s78, %s80
      %p84 = scmp.eq.s32.totalorder %s19, 0
      %p85 = por %p83, %p84
      %p86 = scmp.ne.s32.totalorder %s78, %s80
      %p87 = scmp.eq.s32.totalorder %s24, 5
      %p88 = por %p86, %p87
      %p89 = scmp.ne.s32.totalorder %s80, %s81
      %p90 = scmp.eq.s32.totalorder %s24, 0
      %p91 = por %p89, %p90
      %p92 = scmp.ne.s32.totalorder %s80, %s81
      %p93 = scmp.eq.s32.totalorder %s25, 5
      %p94 = por %p92, %p93
      %p96 = scmp.ne.s32.totalorder %s81, %s95
      %p97 = scmp.eq.s32.totalorder %s25, 0
      %p98 = por %p96, %p97
      %s100 = sadd.s32 %s99, 1
      %p103 = scmp.eq.s32.totalorder %s19, 5
      %p104 = scmp.ne.s32.totalorder %s99, %s101
      %p105 = scmp.eq.s32.totalorder %s19, 0
      %p106 = por %p104, %p105
      %p107 = scmp.ne.s32.totalorder %s99, %s101
      %p108 = scmp.eq.s32.totalorder %s24, 5
      %p109 = por %p107, %p108
      %p110 = scmp.ne.s32.totalorder %s101, %s102
      %p111 = scmp.eq.s32.totalorder %s24, 0
      %p112 = por %p110, %p111
      %p113 = scmp.ne.s32.totalorder %s101, %s102
      %p114 = scmp.eq.s32.totalorder %s25, 5
      %p115 = por %p113, %p114
      %p117 = scmp.ne.s32.totalorder %s102, %s116
      %p118 = scmp.eq.s32.totalorder %s25, 0
      %p119 = por %p117, %p118
      %s121 = sadd.s32 %s120, 1
      %p124 = scmp.eq.s32.totalorder %s19, 5
      %p125 = scmp.ne.s32.totalorder %s120, %s122
      %p126 = scmp.eq.s32.totalorder %s19, 0
      %p127 = por %p125, %p126
      %p128 = scmp.ne.s32.totalorder %s120, %s122
      %p129 = scmp.eq.s32.totalorder %s24, 5
      %p130 = por %p128, %p129
      %p131 = scmp.ne.s32.totalorder %s122, %s123
      %p132 = scmp.eq.s32.totalorder %s24, 0
      %p133 = por %p131, %p132
      %p134 = scmp.ne.s32.totalorder %s122, %s123
      %p135 = scmp.eq.s32.totalorder %s25, 5
      %p136 = por %p134, %p135
      %p138 = scmp.ne.s32.totalorder %s123, %s137
      %p139 = scmp.eq.s32.totalorder %s25, 0
      %p140 = por %p138, %p139
      %s142 = sadd.s32 %s141, 1
      %p145 = scmp.eq.s32.totalorder %s19, 5
      %p146 = scmp.ne.s32.totalorder %s141, %s143
      %p147 = scmp.eq.s32.totalorder %s19, 0
      %p148 = por %p146, %p147
      %p149 = scmp.ne.s32.totalorder %s141, %s143
      %p150 = scmp.eq.s32.totalorder %s24, 5
      %p151 = por %p149, %p150
      %p152 = scmp.ne.s32.totalorder %s143, %s144
      %p153 = scmp.eq.s32.totalorder %s24, 0
      %p154 = por %p152, %p153
      %p155 = scmp.ne.s32.totalorder %s143, %s144
      %p156 = scmp.eq.s32.totalorder %s25, 5
      %p157 = por %p155, %p156
      %p159 = scmp.ne.s32.totalorder %s144, %s158
      %p160 = scmp.eq.s32.totalorder %s25, 0
      %p161 = por %p159, %p160
      %s162 = ssub.s32 %s26, %s45
      %s163 = ssub.s32 %s27, %s41
      %s164 = sor.u32 %s162, %s163
      %p165 = scmp.eq.s32.totalorder %s164, 0
      %s167 = sadd.s32 %s166, 1
      %s168 = scalar_select %p165, %s166, %s167
      %p171 = pneg %p165
      %p172 = scmp.eq.s32.totalorder %s19, 5
      %p173 = por %p171, %p172
      %p174 = scmp.ne.s32.totalorder %s166, %s169
      %p175 = scmp.eq.s32.totalorder %s19, 0
      %p176 = por %p174, %p175
      %p177 = scmp.ne.s32.totalorder %s166, %s169
      %p178 = scmp.eq.s32.totalorder %s24, 5
      %p179 = por %p177, %p178
      %p180 = scmp.ne.s32.totalorder %s169, %s170
      %p181 = scmp.eq.s32.totalorder %s24, 0
      %p182 = por %p180, %p181
      %p183 = scmp.ne.s32.totalorder %s169, %s170
      %p184 = scmp.eq.s32.totalorder %s25, 5
      %p185 = por %p183, %p184
      %p187 = scmp.ne.s32.totalorder %s170, %s186
      %p188 = scmp.eq.s32.totalorder %s25, 0
      %p189 = por %p187, %p188
      %p190 = scmp.le.s32.totalorder 1, %s19
      %p191 = scmp.lt.s32.totalorder %s19, 7
      %p192 = pnand %p190, %p191
      %p193 = pneg %p192
      // Predicated region
      $region9: #{_trans_head_jit.1} parent=5 // pred_check
        _
      $region10: #{_trans_head_jit.1} parent=5 // pred_check_branch
        %195 = sbr.rel (%p192) target = $region12
      $region11: #{_trans_head_jit.1} parent=5 // pred_region
        %s196 = ssub.s32 %s19, 1
        // Predicated region
        $region13: #{_trans_head_jit.1} parent=11 // pred_check
          %p197 = pneg %p91
        $region14: #{_trans_head_jit.1} parent=11 // pred_check_branch
          %199 = sbr.rel (%p197) target = $region16
        $region15: #{_trans_head_jit.1} parent=11 // pred_region
          %s201 = ssub.s32 256, 256
          %202 = vsyncadd [#allocation6], %s201
          %s204 = sshll.u32 [#allocation5], 4
          %s205 = int_to_ptr.vmem [resolvable:$true] %s204
          %207 = dma.hbm_to_vmem [thread:$0]  %s1, 256, %s205, [#allocation6]
        $region16: #{_trans_head_jit.1} parent=11 // pred_fallthru
          _
        // Predicated region
        $region17: #{_trans_head_jit.1} parent=11 // pred_check
          %p208 = pneg %p112
        $region18: #{_trans_head_jit.1} parent=11 // pred_check_branch
          %210 = sbr.rel (%p208) target = $region20
        $region19: #{_trans_head_jit.1} parent=11 // pred_region
          %s212 = ssub.s32 128, 128
          %213 = vsyncadd [#allocation6], %s212
          %s215 = sshll.u32 [#allocation7], 4
          %s216 = int_to_ptr.vmem [resolvable:$true] %s215
          %218 = dma.hbm_to_vmem [thread:$0]  %s2, 128, %s216, [#allocation6]
        $region20: #{_trans_head_jit.1} parent=11 // pred_fallthru
          _
        // Predicated region
        $region21: #{_trans_head_jit.1} parent=11 // pred_check
          %p219 = pneg %p133
        $region22: #{_trans_head_jit.1} parent=11 // pred_check_branch
          %221 = sbr.rel (%p219) target = $region24
        $region23: #{_trans_head_jit.1} parent=11 // pred_region
          %s223 = ssub.s32 16384, 16384
          %224 = vsyncadd [#allocation9], %s223
          %s225 = sshll.u32 [#allocation8], 4
          %s226 = int_to_ptr.vmem [resolvable:$true] %s225
          %231 = dma.hbm_to_vmem [thread:$0]  %s3, 16384, %s226, [#allocation9], 128, 128, 8
        $region24: #{_trans_head_jit.1} parent=11 // pred_fallthru
          _
        // Predicated region
        $region25: #{_trans_head_jit.1} parent=11 // pred_check
          %p232 = pneg %p154
        $region26: #{_trans_head_jit.1} parent=11 // pred_check_branch
          %234 = sbr.rel (%p232) target = $region28
        $region27: #{_trans_head_jit.1} parent=11 // pred_region
          %s236 = ssub.s32 32, 32
          %237 = vsyncadd [#allocation9], %s236
          %s239 = sshll.u32 [#allocation10], 4
          %s240 = int_to_ptr.vmem [resolvable:$true] %s239
          %242 = dma.hbm_to_vmem [thread:$0]  %s4, 32, %s240, [#allocation9]
        $region28: #{_trans_head_jit.1} parent=11 // pred_fallthru
          _
      $region12: #{_trans_head_jit.1} parent=5 // pred_fallthru
        _
      %p243 = scmp.lt.s32.totalorder %s19, 6
      // Predicated region
      $region29: #{_trans_head_jit.1} parent=5 // pred_check
        %p244 = pneg %p243
      $region30: #{_trans_head_jit.1} parent=5 // pred_check_branch
        %246 = sbr.rel (%p244) target = $region32
      $region31: #{_trans_head_jit.1} parent=5 // pred_region
        // Predicated region
        $region33: #{_trans_head_jit.1} parent=31 // pred_check
          %p247 = pneg %p64
        $region34: #{_trans_head_jit.1} parent=31 // pred_check_branch
          %249 = sbr.rel (%p247) target = $region36
        $region35: #{_trans_head_jit.1} parent=31 // pred_region
          %s250 = sand.u32 %s54, 1
          %s251 = scalar_lea.sflag [#allocation3], %s250
          %s252 = sand.u32 %s54, 1
          %s253 = smul.addr %s252, 4
          %s254 = scalar_lea.vmem [#allocation2], %s253
          %s255 = smul.u32 %s27, 3
          %s256 = sadd.s32 %s255, %s28
          %s258 = ssub.s32 64, 64
          %259 = vsyncadd %s251, %s258
          %s260 = smul.addr %s26, 3
          %s261 = sadd.s32 %s256, %s260
          %s262 = smul.addr %s261, 64
          %s263 = scalar_lea.hbm %s0, %s262
          %s265 = sshll.u32 %s254, 4
          %s266 = int_to_ptr.vmem [resolvable:$true] %s265
          %268 = dma.hbm_to_vmem [thread:$0]  %s263, 64, %s266, %s251
        $region36: #{_trans_head_jit.1} parent=31 // pred_fallthru
          _
      $region32: #{_trans_head_jit.1} parent=5 // pred_fallthru
        _
      %p269 = scmp.le.s32.totalorder 1, %s19
      %p270 = scmp.lt.s32.totalorder %s19, 7
      %p271 = pnand %p269, %p270
      %p272 = pneg %p271
      // Predicated region
      $region37: #{_trans_head_jit.1} parent=5 // pred_check
        _
      $region38: #{_trans_head_jit.1} parent=5 // pred_check_branch
        %274 = sbr.rel (%p271) target = $region40
      $region39: #{_trans_head_jit.1} parent=5 // pred_region
        %s275 = ssub.s32 %s19, 1
        %s276 = sand.u32 %s57, 1
        %s277 = scalar_lea.sflag [#allocation3], %s276
        %s278 = sand.u32 %s57, 1
        %s279 = smul.addr %s278, 4
        %s280 = scalar_lea.vmem [#allocation2], %s279
        // Predicated region
        $region41: #{_trans_head_jit.1} parent=39 // pred_check
          %p281 = pneg %p70
        $region42: #{_trans_head_jit.1} parent=39 // pred_check_branch
          %283 = sbr.rel (%p281) target = $region44
        $region43: #{_trans_head_jit.1} parent=39 // pred_region
          %284 = dma.done %s277, 64
        $region44: #{_trans_head_jit.1} parent=39 // pred_fallthru
          _
        // Predicated region
        $region45: #{_trans_head_jit.1} parent=39 // pred_check
          %p285 = pneg %p91
        $region46: #{_trans_head_jit.1} parent=39 // pred_check_branch
          %287 = sbr.rel (%p285) target = $region48
        $region47: #{_trans_head_jit.1} parent=39 // pred_region
          %288 = dma.done [#allocation6], 256
        $region48: #{_trans_head_jit.1} parent=39 // pred_fallthru
          _
        // Predicated region
        $region49: #{_trans_head_jit.1} parent=39 // pred_check
          %p289 = pneg %p112
        $region50: #{_trans_head_jit.1} parent=39 // pred_check_branch
          %291 = sbr.rel (%p289) target = $region52
        $region51: #{_trans_head_jit.1} parent=39 // pred_region
          %292 = dma.done [#allocation6], 128
        $region52: #{_trans_head_jit.1} parent=39 // pred_fallthru
          _
        // Predicated region
        $region53: #{_trans_head_jit.1} parent=39 // pred_check
          %p293 = pneg %p133
        $region54: #{_trans_head_jit.1} parent=39 // pred_check_branch
          %295 = sbr.rel (%p293) target = $region56
        $region55: #{_trans_head_jit.1} parent=39 // pred_region
          %296 = dma.done [#allocation9], 16384
        $region56: #{_trans_head_jit.1} parent=39 // pred_fallthru
          _
        // Predicated region
        $region57: #{_trans_head_jit.1} parent=39 // pred_check
          %p297 = pneg %p154
        $region58: #{_trans_head_jit.1} parent=39 // pred_check_branch
          %299 = sbr.rel (%p297) target = $region60
        $region59: #{_trans_head_jit.1} parent=39 // pred_region
          %300 = dma.done [#allocation9], 32
        $region60: #{_trans_head_jit.1} parent=39 // pred_fallthru
          _
        %s301 = sand.u32 %s57, 1
        %s302 = scalar_lea.sflag [#allocation3], %s301
        %s303 = sand.u32 %s57, 1
        %s304 = smul.addr %s303, 4
        %s305 = scalar_lea.vmem [#allocation2], %s304
        %p306 = pneg %p70
        %p307 = pneg %p67
        %p308 = pneg %p91
        %p309 = pneg %p88
        %p310 = pneg %p112
        %p311 = pneg %p109
        %p312 = pneg %p133
        %p313 = pneg %p130
        %p314 = pneg %p154
        %p315 = pneg %p151
        %p316 = pneg %p182
        %p317 = pneg %p179
        %s318 = sand.u32 %s169, 1
        %s319 = scalar_lea.sflag [#allocation4], %s318
        %s320 = sand.u32 %s169, 1
        %s321 = smul.addr %s320, 2
        %s322 = scalar_lea.vmem [#allocation11], %s321
        %s323 = smul.u32 %s30, 3
        %s324 = sadd.s32 %s323, %s31
        %p326 = scmp.eq.s32.totalorder %s31, 0
        // Predicated region
        $region61: #{_trans_head_jit.1} parent=39 // pred_check
          %p327 = pneg %p326
        $region62: #{_trans_head_jit.1} parent=39 // pred_check_branch
          %329 = sbr.rel (%p327) target = $region64
        $region63: #{_trans_head_jit.1} parent=39 // pred_region
          %v330 = vlaneseq
          %vm331 = vcmp.ge.s32.totalorder %v330, 0
          %vm332 = vcmp.lt.s32.totalorder %v330, 256
          %vm333 = vmand %vm331, %vm332
          %334 = vst.msk [vmem:[%s322] sm:$0x3] %vm333, 0.0
        $region64: #{_trans_head_jit.1} parent=39 // pred_fallthru
          _
        %v335 = vld [vmem:[%s280] sm:$0xf]
        %v336 = vld [vmem:[#allocation5] sm:$0x55]
        %v337 = vld [vmem:[#allocation5 + $0x8] sm:$0x55]
        %339 = vset.pattern.permute.xlu0 0
        %340 = vperm.xlu0 %339, %v335
        %v341 = vpop.permute.xlu0 %340
        %v344 = vunpack.c.l.s4 839922192
        %v345 = vunpack.c.0.s8 %v344
        %v346 = vlaneseq
        %v347 = vshrl.u32 %v346, 7
        %v348 = vsub.s32 %v345, %v347
        %v349 = vrot.slane %v341, %v348
        %v352 = vcombine.high %v336, %v336
        %v354 = vunpack.c.l.s4 1983009808
        %v355 = vunpack.c.0.s8 %v354
        %v356 = vlaneseq
        %v357 = vshrl.u32 %v356, 7
        %v358 = vsub.s32 %v355, %v357
        %v359 = vrot.slane %v336, %v358
        %v361 = vunpack.c.l.s4 1983009808
        %v362 = vunpack.c.0.s8 %v361
        %v363 = vlaneseq
        %v364 = vshrl.u32 %v363, 7
        %v365 = vsub.s32 %v362, %v364
        %v366 = vrot.slane %v352, %v365
        %v367 = vcombine.high %v359, %v359
        %v368 = vcombine.high %v366, %v366
        %v369 = vcombine.high %v337, %v337
        %v371 = vunpack.c.l.s4 1983009808
        %v372 = vunpack.c.0.s8 %v371
        %v373 = vlaneseq
        %v374 = vshrl.u32 %v373, 7
        %v375 = vsub.s32 %v372, %v374
        %v376 = vrot.slane %v337, %v375
        %v378 = vunpack.c.l.s4 1983009808
        %v379 = vunpack.c.0.s8 %v378
        %v380 = vlaneseq
        %v381 = vshrl.u32 %v380, 7
        %v382 = vsub.s32 %v379, %v381
        %v383 = vrot.slane %v369, %v382
        %v384 = vcombine.high %v376, %v376
        %v385 = vcombine.high %v383, %v383
        %v387 = vpack.i.b16 %v359, %v359
        %v389 = vlaneseq
        %v390 = vshrl.u32 %v389, 7
        %v391 = vsub.s32 0, %v390
        %v392 = vrot.slane %v387, %v391
        %v394 = vpack.i.b16 %v367, %v367
        %v396 = vlaneseq
        %v397 = vshrl.u32 %v396, 7
        %v398 = vsub.s32 0, %v397
        %v399 = vrot.slane %v394, %v398
        %v401 = vpack.i.b16 %v366, %v366
        %v403 = vlaneseq
        %v404 = vshrl.u32 %v403, 7
        %v405 = vsub.s32 0, %v404
        %v406 = vrot.slane %v401, %v405
        %v408 = vpack.i.b16 %v368, %v368
        %v410 = vlaneseq
        %v411 = vshrl.u32 %v410, 7
        %v412 = vsub.s32 0, %v411
        %v413 = vrot.slane %v408, %v412
        %v415 = vpack.i.b16 %v376, %v376
        %v417 = vlaneseq
        %v418 = vshrl.u32 %v417, 7
        %v419 = vsub.s32 0, %v418
        %v420 = vrot.slane %v415, %v419
        %v422 = vpack.i.b16 %v384, %v384
        %v424 = vlaneseq
        %v425 = vshrl.u32 %v424, 7
        %v426 = vsub.s32 0, %v425
        %v427 = vrot.slane %v422, %v426
        %v429 = vpack.i.b16 %v383, %v383
        %v431 = vlaneseq
        %v432 = vshrl.u32 %v431, 7
        %v433 = vsub.s32 0, %v432
        %v434 = vrot.slane %v429, %v433
        %v436 = vpack.i.b16 %v385, %v385
        %v438 = vlaneseq
        %v439 = vshrl.u32 %v438, 7
        %v440 = vsub.s32 0, %v439
        %v441 = vrot.slane %v436, %v440
        %v450 = vunpack.c.l.b16 %v392
        %v451 = vunpack.c.l.b16 %v399
        %v452 = vunpack.c.l.b16 %v406
        %v453 = vunpack.c.l.b16 %v413
        %v454 = vunpack.c.l.b16 %v420
        %v455 = vunpack.c.l.b16 %v427
        %v456 = vunpack.c.l.b16 %v434
        %v457 = vunpack.c.l.b16 %v441
        %v458 = vpack.c.b16 %v451, %v450
        %v459 = vpack.c.b16 %v453, %v452
        %v460 = vpack.c.b16 %v455, %v454
        %v461 = vpack.c.b16 %v457, %v456
        %v466 = vmul.bf16 %v349, %v458
        %v467 = vmul.bf16 %v349, %v459
        %v468 = vmul.bf16 %v349, %v460
        %v469 = vmul.bf16 %v349, %v461
        %v470 = vld [vmem:[#allocation7] sm:$0xff]
        %v472 = vcombine.high %v470, %v470
        %v474 = vunpack.c.l.s4 1966171168
        %v475 = vunpack.c.0.s8 %v474
        %v476 = vlaneseq
        %v477 = vshrl.u32 %v476, 7
        %v478 = vsub.s32 %v475, %v477
        %v479 = vrot.slane %v470, %v478
        %v481 = vunpack.c.l.s4 1966171168
        %v482 = vunpack.c.0.s8 %v481
        %v483 = vlaneseq
        %v484 = vshrl.u32 %v483, 7
        %v485 = vsub.s32 %v482, %v484
        %v486 = vrot.slane %v472, %v485
        %v487 = vcombine.high %v479, %v479
        %v488 = vcombine.high %v486, %v486
        %v490 = vunpack.c.l.s4 1966171168
        %v491 = vunpack.c.0.s8 %v490
        %v492 = vlaneseq
        %v493 = vshrl.u32 %v492, 7
        %v494 = vsub.s32 %v491, %v493
        %v495 = vrot.slane %v479, %v494
        %v497 = vunpack.c.l.s4 1966171168
        %v498 = vunpack.c.0.s8 %v497
        %v499 = vlaneseq
        %v500 = vshrl.u32 %v499, 7
        %v501 = vsub.s32 %v498, %v500
        %v502 = vrot.slane %v486, %v501
        %v504 = vunpack.c.l.s4 1966171168
        %v505 = vunpack.c.0.s8 %v504
        %v506 = vlaneseq
        %v507 = vshrl.u32 %v506, 7
        %v508 = vsub.s32 %v505, %v507
        %v509 = vrot.slane %v487, %v508
        %v511 = vunpack.c.l.s4 1966171168
        %v512 = vunpack.c.0.s8 %v511
        %v513 = vlaneseq
        %v514 = vshrl.u32 %v513, 7
        %v515 = vsub.s32 %v512, %v514
        %v516 = vrot.slane %v488, %v515
        %v517 = vcombine.high %v495, %v495
        %v518 = vcombine.high %v502, %v502
        %v519 = vcombine.high %v509, %v509
        %v520 = vcombine.high %v516, %v516
        %v522 = vpack.i.b16 %v495, %v495
        %v524 = vlaneseq
        %v525 = vshrl.u32 %v524, 7
        %v526 = vsub.s32 0, %v525
        %v527 = vrot.slane %v522, %v526
        %v529 = vpack.i.b16 %v509, %v509
        %v531 = vlaneseq
        %v532 = vshrl.u32 %v531, 7
        %v533 = vsub.s32 0, %v532
        %v534 = vrot.slane %v529, %v533
        %v536 = vpack.i.b16 %v517, %v517
        %v538 = vlaneseq
        %v539 = vshrl.u32 %v538, 7
        %v540 = vsub.s32 0, %v539
        %v541 = vrot.slane %v536, %v540
        %v543 = vpack.i.b16 %v519, %v519
        %v545 = vlaneseq
        %v546 = vshrl.u32 %v545, 7
        %v547 = vsub.s32 0, %v546
        %v548 = vrot.slane %v543, %v547
        %v550 = vpack.i.b16 %v502, %v502
        %v552 = vlaneseq
        %v553 = vshrl.u32 %v552, 7
        %v554 = vsub.s32 0, %v553
        %v555 = vrot.slane %v550, %v554
        %v557 = vpack.i.b16 %v516, %v516
        %v559 = vlaneseq
        %v560 = vshrl.u32 %v559, 7
        %v561 = vsub.s32 0, %v560
        %v562 = vrot.slane %v557, %v561
        %v564 = vpack.i.b16 %v518, %v518
        %v566 = vlaneseq
        %v567 = vshrl.u32 %v566, 7
        %v568 = vsub.s32 0, %v567
        %v569 = vrot.slane %v564, %v568
        %v571 = vpack.i.b16 %v520, %v520
        %v573 = vlaneseq
        %v574 = vshrl.u32 %v573, 7
        %v575 = vsub.s32 0, %v574
        %v576 = vrot.slane %v571, %v575
        %v585 = vunpack.c.l.b16 %v527
        %v586 = vunpack.c.l.b16 %v534
        %v587 = vunpack.c.l.b16 %v541
        %v588 = vunpack.c.l.b16 %v548
        %v589 = vunpack.c.l.b16 %v555
        %v590 = vunpack.c.l.b16 %v562
        %v591 = vunpack.c.l.b16 %v569
        %v592 = vunpack.c.l.b16 %v576
        %v593 = vpack.c.b16 %v586, %v585
        %v594 = vpack.c.b16 %v588, %v587
        %v595 = vpack.c.b16 %v590, %v589
        %v596 = vpack.c.b16 %v592, %v591
        %v601 = vadd.bf16 %v466, %v593
        %v602 = vadd.bf16 %v467, %v594
        %v603 = vadd.bf16 %v468, %v595
        %v604 = vadd.bf16 %v469, %v596
        %v605 = vld [vmem:[#allocation5] sm:$0x55]
        %v606 = vld [vmem:[#allocation5 + $0x8] sm:$0x55]
        %607 = vset.pattern.permute.xlu0 1
        %608 = vperm.xlu0 %607, %v335
        %v609 = vpop.permute.xlu0 %608
        %v612 = vunpack.c.l.s4 839922192
        %v613 = vunpack.c.0.s8 %v612
        %v614 = vlaneseq
        %v615 = vshrl.u32 %v614, 7
        %v616 = vsub.s32 %v613, %v615
        %v617 = vrot.slane %v609, %v616
        %v620 = vcombine.high %v605, %v605
        %v622 = vunpack.c.l.s4 1983009808
        %v623 = vunpack.c.0.s8 %v622
        %v624 = vlaneseq
        %v625 = vshrl.u32 %v624, 7
        %v626 = vsub.s32 %v623, %v625
        %v627 = vrot.slane %v605, %v626
        %v629 = vunpack.c.l.s4 1983009808
        %v630 = vunpack.c.0.s8 %v629
        %v631 = vlaneseq
        %v632 = vshrl.u32 %v631, 7
        %v633 = vsub.s32 %v630, %v632
        %v634 = vrot.slane %v620, %v633
        %v635 = vcombine.high %v627, %v627
        %v636 = vcombine.high %v634, %v634
        %v637 = vcombine.high %v606, %v606
        %v639 = vunpack.c.l.s4 1983009808
        %v640 = vunpack.c.0.s8 %v639
        %v641 = vlaneseq
        %v642 = vshrl.u32 %v641, 7
        %v643 = vsub.s32 %v640, %v642
        %v644 = vrot.slane %v606, %v643
        %v646 = vunpack.c.l.s4 1983009808
        %v647 = vunpack.c.0.s8 %v646
        %v648 = vlaneseq
        %v649 = vshrl.u32 %v648, 7
        %v650 = vsub.s32 %v647, %v649
        %v651 = vrot.slane %v637, %v650
        %v652 = vcombine.high %v644, %v644
        %v653 = vcombine.high %v651, %v651
        %v655 = vshrl.u32 %v627, 16
        %v656 = vpack.i.b16 %v655, %v655
        %v658 = vlaneseq
        %v659 = vshrl.u32 %v658, 7
        %v660 = vsub.s32 0, %v659
        %v661 = vrot.slane %v656, %v660
        %v663 = vshrl.u32 %v635, 16
        %v664 = vpack.i.b16 %v663, %v663
        %v666 = vlaneseq
        %v667 = vshrl.u32 %v666, 7
        %v668 = vsub.s32 0, %v667
        %v669 = vrot.slane %v664, %v668
        %v671 = vshrl.u32 %v634, 16
        %v672 = vpack.i.b16 %v671, %v671
        %v674 = vlaneseq
        %v675 = vshrl.u32 %v674, 7
        %v676 = vsub.s32 0, %v675
        %v677 = vrot.slane %v672, %v676
        %v679 = vshrl.u32 %v636, 16
        %v680 = vpack.i.b16 %v679, %v679
        %v682 = vlaneseq
        %v683 = vshrl.u32 %v682, 7
        %v684 = vsub.s32 0, %v683
        %v685 = vrot.slane %v680, %v684
        %v687 = vshrl.u32 %v644, 16
        %v688 = vpack.i.b16 %v687, %v687
        %v690 = vlaneseq
        %v691 = vshrl.u32 %v690, 7
        %v692 = vsub.s32 0, %v691
        %v693 = vrot.slane %v688, %v692
        %v695 = vshrl.u32 %v652, 16
        %v696 = vpack.i.b16 %v695, %v695
        %v698 = vlaneseq
        %v699 = vshrl.u32 %v698, 7
        %v700 = vsub.s32 0, %v699
        %v701 = vrot.slane %v696, %v700
        %v703 = vshrl.u32 %v651, 16
        %v704 = vpack.i.b16 %v703, %v703
        %v706 = vlaneseq
        %v707 = vshrl.u32 %v706, 7
        %v708 = vsub.s32 0, %v707
        %v709 = vrot.slane %v704, %v708
        %v711 = vshrl.u32 %v653, 16
        %v712 = vpack.i.b16 %v711, %v711
        %v714 = vlaneseq
        %v715 = vshrl.u32 %v714, 7
        %v716 = vsub.s32 0, %v715
        %v717 = vrot.slane %v712, %v716
        %v726 = vunpack.c.l.b16 %v661
        %v727 = vunpack.c.l.b16 %v669
        %v728 = vunpack.c.l.b16 %v677
        %v729 = vunpack.c.l.b16 %v685
        %v730 = vunpack.c.l.b16 %v693
        %v731 = vunpack.c.l.b16 %v701
        %v732 = vunpack.c.l.b16 %v709
        %v733 = vunpack.c.l.b16 %v717
        %v734 = vpack.c.b16 %v727, %v726
        %v735 = vpack.c.b16 %v729, %v728
        %v736 = vpack.c.b16 %v731, %v730
        %v737 = vpack.c.b16 %v733, %v732
        %v742 = vmul.bf16 %v617, %v734
        %v743 = vmul.bf16 %v617, %v735
        %v744 = vmul.bf16 %v617, %v736
        %v745 = vmul.bf16 %v617, %v737
        %v746 = vadd.bf16 %v601, %v742
        %v747 = vadd.bf16 %v602, %v743
        %v748 = vadd.bf16 %v603, %v744
        %v749 = vadd.bf16 %v604, %v745
        %v750 = vld [vmem:[#allocation5] sm:$0xaa]
        %v751 = vld [vmem:[#allocation5 + $0x8] sm:$0xaa]
        %752 = vset.pattern.permute.xlu0 2
        %753 = vperm.xlu0 %752, %v335
        %v754 = vpop.permute.xlu0 %753
        %v757 = vunpack.c.l.s4 839922192
        %v758 = vunpack.c.0.s8 %v757
        %v759 = vlaneseq
        %v760 = vshrl.u32 %v759, 7
        %v761 = vsub.s32 %v758, %v760
        %v762 = vrot.slane %v754, %v761
        %v765 = vcombine.high %v750, %v750
        %v767 = vunpack.c.l.s4 1983009808
        %v768 = vunpack.c.0.s8 %v767
        %v769 = vlaneseq
        %v770 = vshrl.u32 %v769, 7
        %v771 = vsub.s32 %v768, %v770
        %v772 = vrot.slane %v750, %v771
        %v774 = vunpack.c.l.s4 1983009808
        %v775 = vunpack.c.0.s8 %v774
        %v776 = vlaneseq
        %v777 = vshrl.u32 %v776, 7
        %v778 = vsub.s32 %v775, %v777
        %v779 = vrot.slane %v765, %v778
        %v780 = vcombine.high %v772, %v772
        %v781 = vcombine.high %v779, %v779
        %v782 = vcombine.high %v751, %v751
        %v784 = vunpack.c.l.s4 1983009808
        %v785 = vunpack.c.0.s8 %v784
        %v786 = vlaneseq
        %v787 = vshrl.u32 %v786, 7
        %v788 = vsub.s32 %v785, %v787
        %v789 = vrot.slane %v751, %v788
        %v791 = vunpack.c.l.s4 1983009808
        %v792 = vunpack.c.0.s8 %v791
        %v793 = vlaneseq
        %v794 = vshrl.u32 %v793, 7
        %v795 = vsub.s32 %v792, %v794
        %v796 = vrot.slane %v782, %v795
        %v797 = vcombine.high %v789, %v789
        %v798 = vcombine.high %v796, %v796
        %v800 = vpack.i.b16 %v772, %v772
        %v802 = vlaneseq
        %v803 = vshrl.u32 %v802, 7
        %v804 = vsub.s32 1, %v803
        %v805 = vrot.slane %v800, %v804
        %v807 = vpack.i.b16 %v780, %v780
        %v809 = vlaneseq
        %v810 = vshrl.u32 %v809, 7
        %v811 = vsub.s32 1, %v810
        %v812 = vrot.slane %v807, %v811
        %v814 = vpack.i.b16 %v779, %v779
        %v816 = vlaneseq
        %v817 = vshrl.u32 %v816, 7
        %v818 = vsub.s32 1, %v817
        %v819 = vrot.slane %v814, %v818
        %v821 = vpack.i.b16 %v781, %v781
        %v823 = vlaneseq
        %v824 = vshrl.u32 %v823, 7
        %v825 = vsub.s32 1, %v824
        %v826 = vrot.slane %v821, %v825
        %v828 = vpack.i.b16 %v789, %v789
        %v830 = vlaneseq
        %v831 = vshrl.u32 %v830, 7
        %v832 = vsub.s32 1, %v831
        %v833 = vrot.slane %v828, %v832
        %v835 = vpack.i.b16 %v797, %v797
        %v837 = vlaneseq
        %v838 = vshrl.u32 %v837, 7
        %v839 = vsub.s32 1, %v838
        %v840 = vrot.slane %v835, %v839
        %v842 = vpack.i.b16 %v796, %v796
        %v844 = vlaneseq
        %v845 = vshrl.u32 %v844, 7
        %v846 = vsub.s32 1, %v845
        %v847 = vrot.slane %v842, %v846
        %v849 = vpack.i.b16 %v798, %v798
        %v851 = vlaneseq
        %v852 = vshrl.u32 %v851, 7
        %v853 = vsub.s32 1, %v852
        %v854 = vrot.slane %v849, %v853
        %v863 = vunpack.c.l.b16 %v805
        %v864 = vunpack.c.l.b16 %v812
        %v865 = vunpack.c.l.b16 %v819
        %v866 = vunpack.c.l.b16 %v826
        %v867 = vunpack.c.l.b16 %v833
        %v868 = vunpack.c.l.b16 %v840
        %v869 = vunpack.c.l.b16 %v847
        %v870 = vunpack.c.l.b16 %v854
        %v871 = vpack.c.b16 %v864, %v863
        %v872 = vpack.c.b16 %v866, %v865
        %v873 = vpack.c.b16 %v868, %v867
        %v874 = vpack.c.b16 %v870, %v869
        %v879 = vmul.bf16 %v762, %v871
        %v880 = vmul.bf16 %v762, %v872
        %v881 = vmul.bf16 %v762, %v873
        %v882 = vmul.bf16 %v762, %v874
        %v883 = vadd.bf16 %v746, %v879
        %v884 = vadd.bf16 %v747, %v880
        %v885 = vadd.bf16 %v748, %v881
        %v886 = vadd.bf16 %v749, %v882
        %v887 = vld [vmem:[#allocation5] sm:$0xaa]
        %v888 = vld [vmem:[#allocation5 + $0x8] sm:$0xaa]
        %889 = vset.pattern.permute.xlu0 3
        %890 = vperm.xlu0 %889, %v335
        %v891 = vpop.permute.xlu0 %890
        %v894 = vunpack.c.l.s4 839922192
        %v895 = vunpack.c.0.s8 %v894
        %v896 = vlaneseq
        %v897 = vshrl.u32 %v896, 7
        %v898 = vsub.s32 %v895, %v897
        %v899 = vrot.slane %v891, %v898
        %v902 = vcombine.high %v887, %v887
        %v904 = vunpack.c.l.s4 1983009808
        %v905 = vunpack.c.0.s8 %v904
        %v906 = vlaneseq
        %v907 = vshrl.u32 %v906, 7
        %v908 = vsub.s32 %v905, %v907
        %v909 = vrot.slane %v887, %v908
        %v911 = vunpack.c.l.s4 1983009808
        %v912 = vunpack.c.0.s8 %v911
        %v913 = vlaneseq
        %v914 = vshrl.u32 %v913, 7
        %v915 = vsub.s32 %v912, %v914
        %v916 = vrot.slane %v902, %v915
        %v917 = vcombine.high %v909, %v909
        %v918 = vcombine.high %v916, %v916
        %v919 = vcombine.high %v888, %v888
        %v921 = vunpack.c.l.s4 1983009808
        %v922 = vunpack.c.0.s8 %v921
        %v923 = vlaneseq
        %v924 = vshrl.u32 %v923, 7
        %v925 = vsub.s32 %v922, %v924
        %v926 = vrot.slane %v888, %v925
        %v928 = vunpack.c.l.s4 1983009808
        %v929 = vunpack.c.0.s8 %v928
        %v930 = vlaneseq
        %v931 = vshrl.u32 %v930, 7
        %v932 = vsub.s32 %v929, %v931
        %v933 = vrot.slane %v919, %v932
        %v934 = vcombine.high %v926, %v926
        %v935 = vcombine.high %v933, %v933
        %v937 = vshrl.u32 %v909, 16
        %v938 = vpack.i.b16 %v937, %v937
        %v940 = vlaneseq
        %v941 = vshrl.u32 %v940, 7
        %v942 = vsub.s32 1, %v941
        %v943 = vrot.slane %v938, %v942
        %v945 = vshrl.u32 %v917, 16
        %v946 = vpack.i.b16 %v945, %v945
        %v948 = vlaneseq
        %v949 = vshrl.u32 %v948, 7
        %v950 = vsub.s32 1, %v949
        %v951 = vrot.slane %v946, %v950
        %v953 = vshrl.u32 %v916, 16
        %v954 = vpack.i.b16 %v953, %v953
        %v956 = vlaneseq
        %v957 = vshrl.u32 %v956, 7
        %v958 = vsub.s32 1, %v957
        %v959 = vrot.slane %v954, %v958
        %v961 = vshrl.u32 %v918, 16
        %v962 = vpack.i.b16 %v961, %v961
        %v964 = vlaneseq
        %v965 = vshrl.u32 %v964, 7
        %v966 = vsub.s32 1, %v965
        %v967 = vrot.slane %v962, %v966
        %v969 = vshrl.u32 %v926, 16
        %v970 = vpack.i.b16 %v969, %v969
        %v972 = vlaneseq
        %v973 = vshrl.u32 %v972, 7
        %v974 = vsub.s32 1, %v973
        %v975 = vrot.slane %v970, %v974
        %v977 = vshrl.u32 %v934, 16
        %v978 = vpack.i.b16 %v977, %v977
        %v980 = vlaneseq
        %v981 = vshrl.u32 %v980, 7
        %v982 = vsub.s32 1, %v981
        %v983 = vrot.slane %v978, %v982
        %v985 = vshrl.u32 %v933, 16
        %v986 = vpack.i.b16 %v985, %v985
        %v988 = vlaneseq
        %v989 = vshrl.u32 %v988, 7
        %v990 = vsub.s32 1, %v989
        %v991 = vrot.slane %v986, %v990
        %v993 = vshrl.u32 %v935, 16
        %v994 = vpack.i.b16 %v993, %v993
        %v996 = vlaneseq
        %v997 = vshrl.u32 %v996, 7
        %v998 = vsub.s32 1, %v997
        %v999 = vrot.slane %v994, %v998
        %v1008 = vunpack.c.l.b16 %v943
        %v1009 = vunpack.c.l.b16 %v951
        %v1010 = vunpack.c.l.b16 %v959
        %v1011 = vunpack.c.l.b16 %v967
        %v1012 = vunpack.c.l.b16 %v975
        %v1013 = vunpack.c.l.b16 %v983
        %v1014 = vunpack.c.l.b16 %v991
        %v1015 = vunpack.c.l.b16 %v999
        %v1016 = vpack.c.b16 %v1009, %v1008
        %v1017 = vpack.c.b16 %v1011, %v1010
        %v1018 = vpack.c.b16 %v1013, %v1012
        %v1019 = vpack.c.b16 %v1015, %v1014
        %v1024 = vmul.bf16 %v899, %v1016
        %v1025 = vmul.bf16 %v899, %v1017
        %v1026 = vmul.bf16 %v899, %v1018
        %v1027 = vmul.bf16 %v899, %v1019
        %v1028 = vadd.bf16 %v883, %v1024
        %v1029 = vadd.bf16 %v884, %v1025
        %v1030 = vadd.bf16 %v885, %v1026
        %v1031 = vadd.bf16 %v886, %v1027
        %v1032 = vmax.bf16 %v1028, 0
        %v1033 = vmax.bf16 %v1029, 0
        %v1034 = vmax.bf16 %v1030, 0
        %v1035 = vmax.bf16 %v1031, 0
        %v1036 = vld [vmem:[#allocation8] sm:$0xff]
        %v1037 = vld [vmem:[#allocation8 + $0x8] sm:$0xff]
        %v1038 = vld [vmem:[#allocation8 + $0x10] sm:$0xff]
        %v1039 = vld [vmem:[#allocation8 + $0x18] sm:$0xff]
        %v1040 = vld [vmem:[#allocation8 + $0x20] sm:$0xff]
        %v1041 = vld [vmem:[#allocation8 + $0x28] sm:$0xff]
        %v1042 = vld [vmem:[#allocation8 + $0x30] sm:$0xff]
        %v1043 = vld [vmem:[#allocation8 + $0x38] sm:$0xff]
        %v1044 = vld [vmem:[#allocation8 + $0x40] sm:$0xff]
        %v1045 = vld [vmem:[#allocation8 + $0x48] sm:$0xff]
        %v1046 = vld [vmem:[#allocation8 + $0x50] sm:$0xff]
        %v1047 = vld [vmem:[#allocation8 + $0x58] sm:$0xff]
        %v1048 = vld [vmem:[#allocation8 + $0x60] sm:$0xff]
        %v1049 = vld [vmem:[#allocation8 + $0x68] sm:$0xff]
        %v1050 = vld [vmem:[#allocation8 + $0x70] sm:$0xff]
        %v1051 = vld [vmem:[#allocation8 + $0x78] sm:$0xff]
        %v1052 = vld [vmem:[#allocation8 + $0x80] sm:$0xff]
        %v1053 = vld [vmem:[#allocation8 + $0x88] sm:$0xff]
        %v1054 = vld [vmem:[#allocation8 + $0x90] sm:$0xff]
        %v1055 = vld [vmem:[#allocation8 + $0x98] sm:$0xff]
        %v1056 = vld [vmem:[#allocation8 + $0xa0] sm:$0xff]
        %v1057 = vld [vmem:[#allocation8 + $0xa8] sm:$0xff]
        %v1058 = vld [vmem:[#allocation8 + $0xb0] sm:$0xff]
        %v1059 = vld [vmem:[#allocation8 + $0xb8] sm:$0xff]
        %v1060 = vld [vmem:[#allocation8 + $0xc0] sm:$0xff]
        %v1061 = vld [vmem:[#allocation8 + $0xc8] sm:$0xff]
        %v1062 = vld [vmem:[#allocation8 + $0xd0] sm:$0xff]
        %v1063 = vld [vmem:[#allocation8 + $0xd8] sm:$0xff]
        %v1064 = vld [vmem:[#allocation8 + $0xe0] sm:$0xff]
        %v1065 = vld [vmem:[#allocation8 + $0xe8] sm:$0xff]
        %v1066 = vld [vmem:[#allocation8 + $0xf0] sm:$0xff]
        %v1067 = vld [vmem:[#allocation8 + $0xf8] sm:$0xff]
        %v1068 = vld [vmem:[#allocation8 + $0x100] sm:$0xff]
        %v1069 = vld [vmem:[#allocation8 + $0x108] sm:$0xff]
        %v1070 = vld [vmem:[#allocation8 + $0x110] sm:$0xff]
        %v1071 = vld [vmem:[#allocation8 + $0x118] sm:$0xff]
        %v1072 = vld [vmem:[#allocation8 + $0x120] sm:$0xff]
        %v1073 = vld [vmem:[#allocation8 + $0x128] sm:$0xff]
        %v1074 = vld [vmem:[#allocation8 + $0x130] sm:$0xff]
        %v1075 = vld [vmem:[#allocation8 + $0x138] sm:$0xff]
        %v1076 = vld [vmem:[#allocation8 + $0x140] sm:$0xff]
        %v1077 = vld [vmem:[#allocation8 + $0x148] sm:$0xff]
        %v1078 = vld [vmem:[#allocation8 + $0x150] sm:$0xff]
        %v1079 = vld [vmem:[#allocation8 + $0x158] sm:$0xff]
        %v1080 = vld [vmem:[#allocation8 + $0x160] sm:$0xff]
        %v1081 = vld [vmem:[#allocation8 + $0x168] sm:$0xff]
        %v1082 = vld [vmem:[#allocation8 + $0x170] sm:$0xff]
        %v1083 = vld [vmem:[#allocation8 + $0x178] sm:$0xff]
        %v1084 = vld [vmem:[#allocation8 + $0x180] sm:$0xff]
        %v1085 = vld [vmem:[#allocation8 + $0x188] sm:$0xff]
        %v1086 = vld [vmem:[#allocation8 + $0x190] sm:$0xff]
        %v1087 = vld [vmem:[#allocation8 + $0x198] sm:$0xff]
        %v1088 = vld [vmem:[#allocation8 + $0x1a0] sm:$0xff]
        %v1089 = vld [vmem:[#allocation8 + $0x1a8] sm:$0xff]
        %v1090 = vld [vmem:[#allocation8 + $0x1b0] sm:$0xff]
        %v1091 = vld [vmem:[#allocation8 + $0x1b8] sm:$0xff]
        %v1092 = vld [vmem:[#allocation8 + $0x1c0] sm:$0xff]
        %v1093 = vld [vmem:[#allocation8 + $0x1c8] sm:$0xff]
        %v1094 = vld [vmem:[#allocation8 + $0x1d0] sm:$0xff]
        %v1095 = vld [vmem:[#allocation8 + $0x1d8] sm:$0xff]
        %v1096 = vld [vmem:[#allocation8 + $0x1e0] sm:$0xff]
        %v1097 = vld [vmem:[#allocation8 + $0x1e8] sm:$0xff]
        %v1098 = vld [vmem:[#allocation8 + $0x1f0] sm:$0xff]
        %v1099 = vld [vmem:[#allocation8 + $0x1f8] sm:$0xff]
        %v1100 = vld [vmem:[#allocation8 + $0x200] sm:$0xff]
        %v1101 = vld [vmem:[#allocation8 + $0x208] sm:$0xff]
        %v1102 = vld [vmem:[#allocation8 + $0x210] sm:$0xff]
        %v1103 = vld [vmem:[#allocation8 + $0x218] sm:$0xff]
        %v1104 = vld [vmem:[#allocation8 + $0x220] sm:$0xff]
        %v1105 = vld [vmem:[#allocation8 + $0x228] sm:$0xff]
        %v1106 = vld [vmem:[#allocation8 + $0x230] sm:$0xff]
        %v1107 = vld [vmem:[#allocation8 + $0x238] sm:$0xff]
        %v1108 = vld [vmem:[#allocation8 + $0x240] sm:$0xff]
        %v1109 = vld [vmem:[#allocation8 + $0x248] sm:$0xff]
        %v1110 = vld [vmem:[#allocation8 + $0x250] sm:$0xff]
        %v1111 = vld [vmem:[#allocation8 + $0x258] sm:$0xff]
        %v1112 = vld [vmem:[#allocation8 + $0x260] sm:$0xff]
        %v1113 = vld [vmem:[#allocation8 + $0x268] sm:$0xff]
        %v1114 = vld [vmem:[#allocation8 + $0x270] sm:$0xff]
        %v1115 = vld [vmem:[#allocation8 + $0x278] sm:$0xff]
        %v1116 = vld [vmem:[#allocation8 + $0x280] sm:$0xff]
        %v1117 = vld [vmem:[#allocation8 + $0x288] sm:$0xff]
        %v1118 = vld [vmem:[#allocation8 + $0x290] sm:$0xff]
        %v1119 = vld [vmem:[#allocation8 + $0x298] sm:$0xff]
        %v1120 = vld [vmem:[#allocation8 + $0x2a0] sm:$0xff]
        %v1121 = vld [vmem:[#allocation8 + $0x2a8] sm:$0xff]
        %v1122 = vld [vmem:[#allocation8 + $0x2b0] sm:$0xff]
        %v1123 = vld [vmem:[#allocation8 + $0x2b8] sm:$0xff]
        %v1124 = vld [vmem:[#allocation8 + $0x2c0] sm:$0xff]
        %v1125 = vld [vmem:[#allocation8 + $0x2c8] sm:$0xff]
        %v1126 = vld [vmem:[#allocation8 + $0x2d0] sm:$0xff]
        %v1127 = vld [vmem:[#allocation8 + $0x2d8] sm:$0xff]
        %v1128 = vld [vmem:[#allocation8 + $0x2e0] sm:$0xff]
        %v1129 = vld [vmem:[#allocation8 + $0x2e8] sm:$0xff]
        %v1130 = vld [vmem:[#allocation8 + $0x2f0] sm:$0xff]
        %v1131 = vld [vmem:[#allocation8 + $0x2f8] sm:$0xff]
        %v1132 = vld [vmem:[#allocation8 + $0x300] sm:$0xff]
        %v1133 = vld [vmem:[#allocation8 + $0x308] sm:$0xff]
        %v1134 = vld [vmem:[#allocation8 + $0x310] sm:$0xff]
        %v1135 = vld [vmem:[#allocation8 + $0x318] sm:$0xff]
        %v1136 = vld [vmem:[#allocation8 + $0x320] sm:$0xff]
        %v1137 = vld [vmem:[#allocation8 + $0x328] sm:$0xff]
        %v1138 = vld [vmem:[#allocation8 + $0x330] sm:$0xff]
        %v1139 = vld [vmem:[#allocation8 + $0x338] sm:$0xff]
        %v1140 = vld [vmem:[#allocation8 + $0x340] sm:$0xff]
        %v1141 = vld [vmem:[#allocation8 + $0x348] sm:$0xff]
        %v1142 = vld [vmem:[#allocation8 + $0x350] sm:$0xff]
        %v1143 = vld [vmem:[#allocation8 + $0x358] sm:$0xff]
        %v1144 = vld [vmem:[#allocation8 + $0x360] sm:$0xff]
        %v1145 = vld [vmem:[#allocation8 + $0x368] sm:$0xff]
        %v1146 = vld [vmem:[#allocation8 + $0x370] sm:$0xff]
        %v1147 = vld [vmem:[#allocation8 + $0x378] sm:$0xff]
        %v1148 = vld [vmem:[#allocation8 + $0x380] sm:$0xff]
        %v1149 = vld [vmem:[#allocation8 + $0x388] sm:$0xff]
        %v1150 = vld [vmem:[#allocation8 + $0x390] sm:$0xff]
        %v1151 = vld [vmem:[#allocation8 + $0x398] sm:$0xff]
        %v1152 = vld [vmem:[#allocation8 + $0x3a0] sm:$0xff]
        %v1153 = vld [vmem:[#allocation8 + $0x3a8] sm:$0xff]
        %v1154 = vld [vmem:[#allocation8 + $0x3b0] sm:$0xff]
        %v1155 = vld [vmem:[#allocation8 + $0x3b8] sm:$0xff]
        %v1156 = vld [vmem:[#allocation8 + $0x3c0] sm:$0xff]
        %v1157 = vld [vmem:[#allocation8 + $0x3c8] sm:$0xff]
        %v1158 = vld [vmem:[#allocation8 + $0x3d0] sm:$0xff]
        %v1159 = vld [vmem:[#allocation8 + $0x3d8] sm:$0xff]
        %v1160 = vld [vmem:[#allocation8 + $0x3e0] sm:$0xff]
        %v1161 = vld [vmem:[#allocation8 + $0x3e8] sm:$0xff]
        %v1162 = vld [vmem:[#allocation8 + $0x3f0] sm:$0xff]
        %v1163 = vld [vmem:[#allocation8 + $0x3f8] sm:$0xff]
        %v1164 = vld [vmem:[#allocation10] sm:$0x3]
        %v1166 = vlaneseq
        %v1167 = vshrl.u32 %v1166, 7
        %v1168 = vsub.s32 0, %v1167
        %v1169 = vrot.slane %v1164, %v1168
        %v1170 = vlaneseq
        %v1171 = vshrl.u32 %v1170, 7
        %v1172 = vsub.s32 1, %v1171
        %v1173 = vrot.slane %v1164, %v1172
        %v1180 = vunpack.c.l.b16 %v1032
        %v1181 = vunpack.c.h.b16 %v1032
        %v1182 = vunpack.c.l.b16 %v1033
        %v1183 = vunpack.c.h.b16 %v1033
        %v1184 = vunpack.c.l.b16 %v1034
        %v1185 = vunpack.c.h.b16 %v1034
        %v1186 = vunpack.c.l.b16 %v1035
        %v1187 = vunpack.c.h.b16 %v1035
        %v1188 = vpack.c.b16 %v1180, %v1180
        %v1189 = vpack.c.b16 %v1181, %v1181
        %v1190 = vpack.c.b16 %v1182, %v1182
        %v1191 = vpack.c.b16 %v1183, %v1183
        %v1192 = vpack.c.b16 %v1184, %v1184
        %v1193 = vpack.c.b16 %v1185, %v1185
        %v1194 = vpack.c.b16 %v1186, %v1186
        %v1195 = vpack.c.b16 %v1187, %v1187
        %v1332 = vunpack.c.l.b16 %v1036
        %v1333 = vunpack.c.h.b16 %v1036
        %v1334 = vunpack.c.l.b16 %v1037
        %v1335 = vunpack.c.h.b16 %v1037
        %v1336 = vunpack.c.l.b16 %v1038
        %v1337 = vunpack.c.h.b16 %v1038
        %v1338 = vunpack.c.l.b16 %v1039
        %v1339 = vunpack.c.h.b16 %v1039
        %v1340 = vunpack.c.l.b16 %v1040
        %v1341 = vunpack.c.h.b16 %v1040
        %v1342 = vunpack.c.l.b16 %v1041
        %v1343 = vunpack.c.h.b16 %v1041
        %v1344 = vunpack.c.l.b16 %v1042
        %v1345 = vunpack.c.h.b16 %v1042
        %v1346 = vunpack.c.l.b16 %v1043
        %v1347 = vunpack.c.h.b16 %v1043
        %v1348 = vunpack.c.l.b16 %v1044
        %v1349 = vunpack.c.h.b16 %v1044
        %v1350 = vunpack.c.l.b16 %v1045
        %v1351 = vunpack.c.h.b16 %v1045
        %v1352 = vunpack.c.l.b16 %v1046
        %v1353 = vunpack.c.h.b16 %v1046
        %v1354 = vunpack.c.l.b16 %v1047
        %v1355 = vunpack.c.h.b16 %v1047
        %v1356 = vunpack.c.l.b16 %v1048
        %v1357 = vunpack.c.h.b16 %v1048
        %v1358 = vunpack.c.l.b16 %v1049
        %v1359 = vunpack.c.h.b16 %v1049
        %v1360 = vunpack.c.l.b16 %v1050
        %v1361 = vunpack.c.h.b16 %v1050
        %v1362 = vunpack.c.l.b16 %v1051
        %v1363 = vunpack.c.h.b16 %v1051
        %v1364 = vunpack.c.l.b16 %v1052
        %v1365 = vunpack.c.h.b16 %v1052
        %v1366 = vunpack.c.l.b16 %v1053
        %v1367 = vunpack.c.h.b16 %v1053
        %v1368 = vunpack.c.l.b16 %v1054
        %v1369 = vunpack.c.h.b16 %v1054
        %v1370 = vunpack.c.l.b16 %v1055
        %v1371 = vunpack.c.h.b16 %v1055
        %v1372 = vunpack.c.l.b16 %v1056
        %v1373 = vunpack.c.h.b16 %v1056
        %v1374 = vunpack.c.l.b16 %v1057
        %v1375 = vunpack.c.h.b16 %v1057
        %v1376 = vunpack.c.l.b16 %v1058
        %v1377 = vunpack.c.h.b16 %v1058
        %v1378 = vunpack.c.l.b16 %v1059
        %v1379 = vunpack.c.h.b16 %v1059
        %v1380 = vunpack.c.l.b16 %v1060
        %v1381 = vunpack.c.h.b16 %v1060
        %v1382 = vunpack.c.l.b16 %v1061
        %v1383 = vunpack.c.h.b16 %v1061
        %v1384 = vunpack.c.l.b16 %v1062
        %v1385 = vunpack.c.h.b16 %v1062
        %v1386 = vunpack.c.l.b16 %v1063
        %v1387 = vunpack.c.h.b16 %v1063
        %v1388 = vunpack.c.l.b16 %v1064
        %v1389 = vunpack.c.h.b16 %v1064
        %v1390 = vunpack.c.l.b16 %v1065
        %v1391 = vunpack.c.h.b16 %v1065
        %v1392 = vunpack.c.l.b16 %v1066
        %v1393 = vunpack.c.h.b16 %v1066
        %v1394 = vunpack.c.l.b16 %v1067
        %v1395 = vunpack.c.h.b16 %v1067
        %v1396 = vunpack.c.l.b16 %v1068
        %v1397 = vunpack.c.h.b16 %v1068
        %v1398 = vunpack.c.l.b16 %v1069
        %v1399 = vunpack.c.h.b16 %v1069
        %v1400 = vunpack.c.l.b16 %v1070
        %v1401 = vunpack.c.h.b16 %v1070
        %v1402 = vunpack.c.l.b16 %v1071
        %v1403 = vunpack.c.h.b16 %v1071
        %v1404 = vunpack.c.l.b16 %v1072
        %v1405 = vunpack.c.h.b16 %v1072
        %v1406 = vunpack.c.l.b16 %v1073
        %v1407 = vunpack.c.h.b16 %v1073
        %v1408 = vunpack.c.l.b16 %v1074
        %v1409 = vunpack.c.h.b16 %v1074
        %v1410 = vunpack.c.l.b16 %v1075
        %v1411 = vunpack.c.h.b16 %v1075
        %v1412 = vunpack.c.l.b16 %v1076
        %v1413 = vunpack.c.h.b16 %v1076
        %v1414 = vunpack.c.l.b16 %v1077
        %v1415 = vunpack.c.h.b16 %v1077
        %v1416 = vunpack.c.l.b16 %v1078
        %v1417 = vunpack.c.h.b16 %v1078
        %v1418 = vunpack.c.l.b16 %v1079
        %v1419 = vunpack.c.h.b16 %v1079
        %v1420 = vunpack.c.l.b16 %v1080
        %v1421 = vunpack.c.h.b16 %v1080
        %v1422 = vunpack.c.l.b16 %v1081
        %v1423 = vunpack.c.h.b16 %v1081
        %v1424 = vunpack.c.l.b16 %v1082
        %v1425 = vunpack.c.h.b16 %v1082
        %v1426 = vunpack.c.l.b16 %v1083
        %v1427 = vunpack.c.h.b16 %v1083
        %v1428 = vunpack.c.l.b16 %v1084
        %v1429 = vunpack.c.h.b16 %v1084
        %v1430 = vunpack.c.l.b16 %v1085
        %v1431 = vunpack.c.h.b16 %v1085
        %v1432 = vunpack.c.l.b16 %v1086
        %v1433 = vunpack.c.h.b16 %v1086
        %v1434 = vunpack.c.l.b16 %v1087
        %v1435 = vunpack.c.h.b16 %v1087
        %v1436 = vunpack.c.l.b16 %v1088
        %v1437 = vunpack.c.h.b16 %v1088
        %v1438 = vunpack.c.l.b16 %v1089
        %v1439 = vunpack.c.h.b16 %v1089
        %v1440 = vunpack.c.l.b16 %v1090
        %v1441 = vunpack.c.h.b16 %v1090
        %v1442 = vunpack.c.l.b16 %v1091
        %v1443 = vunpack.c.h.b16 %v1091
        %v1444 = vunpack.c.l.b16 %v1092
        %v1445 = vunpack.c.h.b16 %v1092
        %v1446 = vunpack.c.l.b16 %v1093
        %v1447 = vunpack.c.h.b16 %v1093
        %v1448 = vunpack.c.l.b16 %v1094
        %v1449 = vunpack.c.h.b16 %v1094
        %v1450 = vunpack.c.l.b16 %v1095
        %v1451 = vunpack.c.h.b16 %v1095
        %v1452 = vunpack.c.l.b16 %v1096
        %v1453 = vunpack.c.h.b16 %v1096
        %v1454 = vunpack.c.l.b16 %v1097
        %v1455 = vunpack.c.h.b16 %v1097
        %v1456 = vunpack.c.l.b16 %v1098
        %v1457 = vunpack.c.h.b16 %v1098
        %v1458 = vunpack.c.l.b16 %v1099
        %v1459 = vunpack.c.h.b16 %v1099
        %v1460 = vunpack.c.l.b16 %v1100
        %v1461 = vunpack.c.h.b16 %v1100
        %v1462 = vunpack.c.l.b16 %v1101
        %v1463 = vunpack.c.h.b16 %v1101
        %v1464 = vunpack.c.l.b16 %v1102
        %v1465 = vunpack.c.h.b16 %v1102
        %v1466 = vunpack.c.l.b16 %v1103
        %v1467 = vunpack.c.h.b16 %v1103
        %v1468 = vunpack.c.l.b16 %v1104
        %v1469 = vunpack.c.h.b16 %v1104
        %v1470 = vunpack.c.l.b16 %v1105
        %v1471 = vunpack.c.h.b16 %v1105
        %v1472 = vunpack.c.l.b16 %v1106
        %v1473 = vunpack.c.h.b16 %v1106
        %v1474 = vunpack.c.l.b16 %v1107
        %v1475 = vunpack.c.h.b16 %v1107
        %v1476 = vunpack.c.l.b16 %v1108
        %v1477 = vunpack.c.h.b16 %v1108
        %v1478 = vunpack.c.l.b16 %v1109
        %v1479 = vunpack.c.h.b16 %v1109
        %v1480 = vunpack.c.l.b16 %v1110
        %v1481 = vunpack.c.h.b16 %v1110
        %v1482 = vunpack.c.l.b16 %v1111
        %v1483 = vunpack.c.h.b16 %v1111
        %v1484 = vunpack.c.l.b16 %v1112
        %v1485 = vunpack.c.h.b16 %v1112
        %v1486 = vunpack.c.l.b16 %v1113
        %v1487 = vunpack.c.h.b16 %v1113
        %v1488 = vunpack.c.l.b16 %v1114
        %v1489 = vunpack.c.h.b16 %v1114
        %v1490 = vunpack.c.l.b16 %v1115
        %v1491 = vunpack.c.h.b16 %v1115
        %v1492 = vunpack.c.l.b16 %v1116
        %v1493 = vunpack.c.h.b16 %v1116
        %v1494 = vunpack.c.l.b16 %v1117
        %v1495 = vunpack.c.h.b16 %v1117
        %v1496 = vunpack.c.l.b16 %v1118
        %v1497 = vunpack.c.h.b16 %v1118
        %v1498 = vunpack.c.l.b16 %v1119
        %v1499 = vunpack.c.h.b16 %v1119
        %v1500 = vunpack.c.l.b16 %v1120
        %v1501 = vunpack.c.h.b16 %v1120
        %v1502 = vunpack.c.l.b16 %v1121
        %v1503 = vunpack.c.h.b16 %v1121
        %v1504 = vunpack.c.l.b16 %v1122
        %v1505 = vunpack.c.h.b16 %v1122
        %v1506 = vunpack.c.l.b16 %v1123
        %v1507 = vunpack.c.h.b16 %v1123
        %v1508 = vunpack.c.l.b16 %v1124
        %v1509 = vunpack.c.h.b16 %v1124
        %v1510 = vunpack.c.l.b16 %v1125
        %v1511 = vunpack.c.h.b16 %v1125
        %v1512 = vunpack.c.l.b16 %v1126
        %v1513 = vunpack.c.h.b16 %v1126
        %v1514 = vunpack.c.l.b16 %v1127
        %v1515 = vunpack.c.h.b16 %v1127
        %v1516 = vunpack.c.l.b16 %v1128
        %v1517 = vunpack.c.h.b16 %v1128
        %v1518 = vunpack.c.l.b16 %v1129
        %v1519 = vunpack.c.h.b16 %v1129
        %v1520 = vunpack.c.l.b16 %v1130
        %v1521 = vunpack.c.h.b16 %v1130
        %v1522 = vunpack.c.l.b16 %v1131
        %v1523 = vunpack.c.h.b16 %v1131
        %v1524 = vunpack.c.l.b16 %v1132
        %v1525 = vunpack.c.h.b16 %v1132
        %v1526 = vunpack.c.l.b16 %v1133
        %v1527 = vunpack.c.h.b16 %v1133
        %v1528 = vunpack.c.l.b16 %v1134
        %v1529 = vunpack.c.h.b16 %v1134
        %v1530 = vunpack.c.l.b16 %v1135
        %v1531 = vunpack.c.h.b16 %v1135
        %v1532 = vunpack.c.l.b16 %v1136
        %v1533 = vunpack.c.h.b16 %v1136
        %v1534 = vunpack.c.l.b16 %v1137
        %v1535 = vunpack.c.h.b16 %v1137
        %v1536 = vunpack.c.l.b16 %v1138
        %v1537 = vunpack.c.h.b16 %v1138
        %v1538 = vunpack.c.l.b16 %v1139
        %v1539 = vunpack.c.h.b16 %v1139
        %v1540 = vunpack.c.l.b16 %v1140
        %v1541 = vunpack.c.h.b16 %v1140
        %v1542 = vunpack.c.l.b16 %v1141
        %v1543 = vunpack.c.h.b16 %v1141
        %v1544 = vunpack.c.l.b16 %v1142
        %v1545 = vunpack.c.h.b16 %v1142
        %v1546 = vunpack.c.l.b16 %v1143
        %v1547 = vunpack.c.h.b16 %v1143
        %v1548 = vunpack.c.l.b16 %v1144
        %v1549 = vunpack.c.h.b16 %v1144
        %v1550 = vunpack.c.l.b16 %v1145
        %v1551 = vunpack.c.h.b16 %v1145
        %v1552 = vunpack.c.l.b16 %v1146
        %v1553 = vunpack.c.h.b16 %v1146
        %v1554 = vunpack.c.l.b16 %v1147
        %v1555 = vunpack.c.h.b16 %v1147
        %v1556 = vunpack.c.l.b16 %v1148
        %v1557 = vunpack.c.h.b16 %v1148
        %v1558 = vunpack.c.l.b16 %v1149
        %v1559 = vunpack.c.h.b16 %v1149
        %v1560 = vunpack.c.l.b16 %v1150
        %v1561 = vunpack.c.h.b16 %v1150
        %v1562 = vunpack.c.l.b16 %v1151
        %v1563 = vunpack.c.h.b16 %v1151
        %v1564 = vunpack.c.l.b16 %v1152
        %v1565 = vunpack.c.h.b16 %v1152
        %v1566 = vunpack.c.l.b16 %v1153
        %v1567 = vunpack.c.h.b16 %v1153
        %v1568 = vunpack.c.l.b16 %v1154
        %v1569 = vunpack.c.h.b16 %v1154
        %v1570 = vunpack.c.l.b16 %v1155
        %v1571 = vunpack.c.h.b16 %v1155
        %v1572 = vunpack.c.l.b16 %v1156
        %v1573 = vunpack.c.h.b16 %v1156
        %v1574 = vunpack.c.l.b16 %v1157
        %v1575 = vunpack.c.h.b16 %v1157
        %v1576 = vunpack.c.l.b16 %v1158
        %v1577 = vunpack.c.h.b16 %v1158
        %v1578 = vunpack.c.l.b16 %v1159
        %v1579 = vunpack.c.h.b16 %v1159
        %v1580 = vunpack.c.l.b16 %v1160
        %v1581 = vunpack.c.h.b16 %v1160
        %v1582 = vunpack.c.l.b16 %v1161
        %v1583 = vunpack.c.h.b16 %v1161
        %v1584 = vunpack.c.l.b16 %v1162
        %v1585 = vunpack.c.h.b16 %v1162
        %v1586 = vunpack.c.l.b16 %v1163
        %v1587 = vunpack.c.h.b16 %v1163
        %v1588 = vpack.c.b16 %v1334, %v1332
        %v1589 = vpack.c.b16 %v1335, %v1333
        %v1590 = vpack.c.b16 %v1338, %v1336
        %v1591 = vpack.c.b16 %v1339, %v1337
        %v1592 = vpack.c.b16 %v1342, %v1340
        %v1593 = vpack.c.b16 %v1343, %v1341
        %v1594 = vpack.c.b16 %v1346, %v1344
        %v1595 = vpack.c.b16 %v1347, %v1345
        %v1596 = vpack.c.b16 %v1350, %v1348
        %v1597 = vpack.c.b16 %v1351, %v1349
        %v1598 = vpack.c.b16 %v1354, %v1352
        %v1599 = vpack.c.b16 %v1355, %v1353
        %v1600 = vpack.c.b16 %v1358, %v1356
        %v1601 = vpack.c.b16 %v1359, %v1357
        %v1602 = vpack.c.b16 %v1362, %v1360
        %v1603 = vpack.c.b16 %v1363, %v1361
        %v1604 = vpack.c.b16 %v1366, %v1364
        %v1605 = vpack.c.b16 %v1367, %v1365
        %v1606 = vpack.c.b16 %v1370, %v1368
        %v1607 = vpack.c.b16 %v1371, %v1369
        %v1608 = vpack.c.b16 %v1374, %v1372
        %v1609 = vpack.c.b16 %v1375, %v1373
        %v1610 = vpack.c.b16 %v1378, %v1376
        %v1611 = vpack.c.b16 %v1379, %v1377
        %v1612 = vpack.c.b16 %v1382, %v1380
        %v1613 = vpack.c.b16 %v1383, %v1381
        %v1614 = vpack.c.b16 %v1386, %v1384
        %v1615 = vpack.c.b16 %v1387, %v1385
        %v1616 = vpack.c.b16 %v1390, %v1388
        %v1617 = vpack.c.b16 %v1391, %v1389
        %v1618 = vpack.c.b16 %v1394, %v1392
        %v1619 = vpack.c.b16 %v1395, %v1393
        %v1620 = vpack.c.b16 %v1398, %v1396
        %v1621 = vpack.c.b16 %v1399, %v1397
        %v1622 = vpack.c.b16 %v1402, %v1400
        %v1623 = vpack.c.b16 %v1403, %v1401
        %v1624 = vpack.c.b16 %v1406, %v1404
        %v1625 = vpack.c.b16 %v1407, %v1405
        %v1626 = vpack.c.b16 %v1410, %v1408
        %v1627 = vpack.c.b16 %v1411, %v1409
        %v1628 = vpack.c.b16 %v1414, %v1412
        %v1629 = vpack.c.b16 %v1415, %v1413
        %v1630 = vpack.c.b16 %v1418, %v1416
        %v1631 = vpack.c.b16 %v1419, %v1417
        %v1632 = vpack.c.b16 %v1422, %v1420
        %v1633 = vpack.c.b16 %v1423, %v1421
        %v1634 = vpack.c.b16 %v1426, %v1424
        %v1635 = vpack.c.b16 %v1427, %v1425
        %v1636 = vpack.c.b16 %v1430, %v1428
        %v1637 = vpack.c.b16 %v1431, %v1429
        %v1638 = vpack.c.b16 %v1434, %v1432
        %v1639 = vpack.c.b16 %v1435, %v1433
        %v1640 = vpack.c.b16 %v1438, %v1436
        %v1641 = vpack.c.b16 %v1439, %v1437
        %v1642 = vpack.c.b16 %v1442, %v1440
        %v1643 = vpack.c.b16 %v1443, %v1441
        %v1644 = vpack.c.b16 %v1446, %v1444
        %v1645 = vpack.c.b16 %v1447, %v1445
        %v1646 = vpack.c.b16 %v1450, %v1448
        %v1647 = vpack.c.b16 %v1451, %v1449
        %v1648 = vpack.c.b16 %v1454, %v1452
        %v1649 = vpack.c.b16 %v1455, %v1453
        %v1650 = vpack.c.b16 %v1458, %v1456
        %v1651 = vpack.c.b16 %v1459, %v1457
        %v1652 = vpack.c.b16 %v1462, %v1460
        %v1653 = vpack.c.b16 %v1463, %v1461
        %v1654 = vpack.c.b16 %v1466, %v1464
        %v1655 = vpack.c.b16 %v1467, %v1465
        %v1656 = vpack.c.b16 %v1470, %v1468
        %v1657 = vpack.c.b16 %v1471, %v1469
        %v1658 = vpack.c.b16 %v1474, %v1472
        %v1659 = vpack.c.b16 %v1475, %v1473
        %v1660 = vpack.c.b16 %v1478, %v1476
        %v1661 = vpack.c.b16 %v1479, %v1477
        %v1662 = vpack.c.b16 %v1482, %v1480
        %v1663 = vpack.c.b16 %v1483, %v1481
        %v1664 = vpack.c.b16 %v1486, %v1484
        %v1665 = vpack.c.b16 %v1487, %v1485
        %v1666 = vpack.c.b16 %v1490, %v1488
        %v1667 = vpack.c.b16 %v1491, %v1489
        %v1668 = vpack.c.b16 %v1494, %v1492
        %v1669 = vpack.c.b16 %v1495, %v1493
        %v1670 = vpack.c.b16 %v1498, %v1496
        %v1671 = vpack.c.b16 %v1499, %v1497
        %v1672 = vpack.c.b16 %v1502, %v1500
        %v1673 = vpack.c.b16 %v1503, %v1501
        %v1674 = vpack.c.b16 %v1506, %v1504
        %v1675 = vpack.c.b16 %v1507, %v1505
        %v1676 = vpack.c.b16 %v1510, %v1508
        %v1677 = vpack.c.b16 %v1511, %v1509
        %v1678 = vpack.c.b16 %v1514, %v1512
        %v1679 = vpack.c.b16 %v1515, %v1513
        %v1680 = vpack.c.b16 %v1518, %v1516
        %v1681 = vpack.c.b16 %v1519, %v1517
        %v1682 = vpack.c.b16 %v1522, %v1520
        %v1683 = vpack.c.b16 %v1523, %v1521
        %v1684 = vpack.c.b16 %v1526, %v1524
        %v1685 = vpack.c.b16 %v1527, %v1525
        %v1686 = vpack.c.b16 %v1530, %v1528
        %v1687 = vpack.c.b16 %v1531, %v1529
        %v1688 = vpack.c.b16 %v1534, %v1532
        %v1689 = vpack.c.b16 %v1535, %v1533
        %v1690 = vpack.c.b16 %v1538, %v1536
        %v1691 = vpack.c.b16 %v1539, %v1537
        %v1692 = vpack.c.b16 %v1542, %v1540
        %v1693 = vpack.c.b16 %v1543, %v1541
        %v1694 = vpack.c.b16 %v1546, %v1544
        %v1695 = vpack.c.b16 %v1547, %v1545
        %v1696 = vpack.c.b16 %v1550, %v1548
        %v1697 = vpack.c.b16 %v1551, %v1549
        %v1698 = vpack.c.b16 %v1554, %v1552
        %v1699 = vpack.c.b16 %v1555, %v1553
        %v1700 = vpack.c.b16 %v1558, %v1556
        %v1701 = vpack.c.b16 %v1559, %v1557
        %v1702 = vpack.c.b16 %v1562, %v1560
        %v1703 = vpack.c.b16 %v1563, %v1561
        %v1704 = vpack.c.b16 %v1566, %v1564
        %v1705 = vpack.c.b16 %v1567, %v1565
        %v1706 = vpack.c.b16 %v1570, %v1568
        %v1707 = vpack.c.b16 %v1571, %v1569
        %v1708 = vpack.c.b16 %v1574, %v1572
        %v1709 = vpack.c.b16 %v1575, %v1573
        %v1710 = vpack.c.b16 %v1578, %v1576
        %v1711 = vpack.c.b16 %v1579, %v1577
        %v1712 = vpack.c.b16 %v1582, %v1580
        %v1713 = vpack.c.b16 %v1583, %v1581
        %v1714 = vpack.c.b16 %v1586, %v1584
        %v1715 = vpack.c.b16 %v1587, %v1585
        %1844 = vmatprep.subr.bf16.mxu0 %v1589
        %1845 = vmatpush1.bf16.msra.mxu0 %v1588
        %1846 = vmatprep.subr.bf16.mxu0 %v1591
        %1847 = vmatpush1.bf16.msra.mxu0 %v1590
        %1848 = vmatprep.subr.bf16.mxu0 %v1593
        %1849 = vmatpush1.bf16.msra.mxu0 %v1592
        %1850 = vmatprep.subr.bf16.mxu0 %v1595
        %1851 = vmatpush1.bf16.msra.mxu0 %v1594
        %1852 = vmatprep.subr.bf16.mxu0 %v1597
        %1853 = vmatpush1.bf16.msra.mxu0 %v1596
        %1854 = vmatprep.subr.bf16.mxu0 %v1599
        %1855 = vmatpush1.bf16.msra.mxu0 %v1598
        %1856 = vmatprep.subr.bf16.mxu0 %v1601
        %1857 = vmatpush1.bf16.msra.mxu0 %v1600
        %1858 = vmatprep.subr.bf16.mxu0 %v1603
        %1859 = vmatpush1.bf16.msra.mxu0 %v1602
        %1860 = vmatprep.subr.bf16.mxu0 %v1605
        %1861 = vmatpush1.bf16.msra.mxu0 %v1604
        %1862 = vmatprep.subr.bf16.mxu0 %v1607
        %1863 = vmatpush1.bf16.msra.mxu0 %v1606
        %1864 = vmatprep.subr.bf16.mxu0 %v1609
        %1865 = vmatpush1.bf16.msra.mxu0 %v1608
        %1866 = vmatprep.subr.bf16.mxu0 %v1611
        %1867 = vmatpush1.bf16.msra.mxu0 %v1610
        %1868 = vmatprep.subr.bf16.mxu0 %v1613
        %1869 = vmatpush1.bf16.msra.mxu0 %v1612
        %1870 = vmatprep.subr.bf16.mxu0 %v1615
        %1871 = vmatpush1.bf16.msra.mxu0 %v1614
        %1872 = vmatprep.subr.bf16.mxu0 %v1617
        %1873 = vmatpush1.bf16.msra.mxu0 %v1616
        %1874 = vmatprep.subr.bf16.mxu0 %v1619
        %1875 = vmatpush1.bf16.msra.mxu0 %v1618
        %1876 = vmatprep.mubr.bf16.mxu0 %v1189
        %1877 = vmatmul.mubr.bf16.gmra.mrb[0].mxu0 %v1188
        %v1878 = vpop.f32.mrb[0].mxu0
        %v1879 = vadd.f32 %v1169, %v1878
        %v1880 = vpop.f32.mrb[0].mxu0
        %v1881 = vadd.f32 %v1173, %v1880
        %v1882 = vpop.f32.mrb[0].mxu0
        %v1883 = vpop.f32.mrb[0].mxu0
        %1884 = vdwg.mxu0
        %1885 = vmatprep.subr.bf16.mxu0 %v1621
        %1886 = vmatpush1.bf16.msra.mxu0 %v1620
        %1887 = vmatprep.subr.bf16.mxu0 %v1623
        %1888 = vmatpush1.bf16.msra.mxu0 %v1622
        %1889 = vmatprep.subr.bf16.mxu0 %v1625
        %1890 = vmatpush1.bf16.msra.mxu0 %v1624
        %1891 = vmatprep.subr.bf16.mxu0 %v1627
        %1892 = vmatpush1.bf16.msra.mxu0 %v1626
        %1893 = vmatprep.subr.bf16.mxu0 %v1629
        %1894 = vmatpush1.bf16.msra.mxu0 %v1628
        %1895 = vmatprep.subr.bf16.mxu0 %v1631
        %1896 = vmatpush1.bf16.msra.mxu0 %v1630
        %1897 = vmatprep.subr.bf16.mxu0 %v1633
        %1898 = vmatpush1.bf16.msra.mxu0 %v1632
        %1899 = vmatprep.subr.bf16.mxu0 %v1635
        %1900 = vmatpush1.bf16.msra.mxu0 %v1634
        %1901 = vmatprep.subr.bf16.mxu0 %v1637
        %1902 = vmatpush1.bf16.msra.mxu0 %v1636
        %1903 = vmatprep.subr.bf16.mxu0 %v1639
        %1904 = vmatpush1.bf16.msra.mxu0 %v1638
        %1905 = vmatprep.subr.bf16.mxu0 %v1641
        %1906 = vmatpush1.bf16.msra.mxu0 %v1640
        %1907 = vmatprep.subr.bf16.mxu0 %v1643
        %1908 = vmatpush1.bf16.msra.mxu0 %v1642
        %1909 = vmatprep.subr.bf16.mxu0 %v1645
        %1910 = vmatpush1.bf16.msra.mxu0 %v1644
        %1911 = vmatprep.subr.bf16.mxu0 %v1647
        %1912 = vmatpush1.bf16.msra.mxu0 %v1646
        %1913 = vmatprep.subr.bf16.mxu0 %v1649
        %1914 = vmatpush1.bf16.msra.mxu0 %v1648
        %1915 = vmatprep.subr.bf16.mxu0 %v1651
        %1916 = vmatpush1.bf16.msra.mxu0 %v1650
        %1917 = vmatprep.mubr.bf16.mxu0 %v1191
        %1918 = vmatmul.mubr.bf16.gmra.mrb[0].mxu0 %v1190
        %v1919 = vpop.f32.mrb[0].mxu0
        %v1920 = vadd.f32 %v1879, %v1919
        %v1921 = vpop.f32.mrb[0].mxu0
        %v1922 = vadd.f32 %v1881, %v1921
        %v1923 = vpop.f32.mrb[0].mxu0
        %v1924 = vpop.f32.mrb[0].mxu0
        %1925 = vdwg.mxu0
        %1926 = vmatprep.subr.bf16.mxu0 %v1653
        %1927 = vmatpush1.bf16.msra.mxu0 %v1652
        %1928 = vmatprep.subr.bf16.mxu0 %v1655
        %1929 = vmatpush1.bf16.msra.mxu0 %v1654
        %1930 = vmatprep.subr.bf16.mxu0 %v1657
        %1931 = vmatpush1.bf16.msra.mxu0 %v1656
        %1932 = vmatprep.subr.bf16.mxu0 %v1659
        %1933 = vmatpush1.bf16.msra.mxu0 %v1658
        %1934 = vmatprep.subr.bf16.mxu0 %v1661
        %1935 = vmatpush1.bf16.msra.mxu0 %v1660
        %1936 = vmatprep.subr.bf16.mxu0 %v1663
        %1937 = vmatpush1.bf16.msra.mxu0 %v1662
        %1938 = vmatprep.subr.bf16.mxu0 %v1665
        %1939 = vmatpush1.bf16.msra.mxu0 %v1664
        %1940 = vmatprep.subr.bf16.mxu0 %v1667
        %1941 = vmatpush1.bf16.msra.mxu0 %v1666
        %1942 = vmatprep.subr.bf16.mxu0 %v1669
        %1943 = vmatpush1.bf16.msra.mxu0 %v1668
        %1944 = vmatprep.subr.bf16.mxu0 %v1671
        %1945 = vmatpush1.bf16.msra.mxu0 %v1670
        %1946 = vmatprep.subr.bf16.mxu0 %v1673
        %1947 = vmatpush1.bf16.msra.mxu0 %v1672
        %1948 = vmatprep.subr.bf16.mxu0 %v1675
        %1949 = vmatpush1.bf16.msra.mxu0 %v1674
        %1950 = vmatprep.subr.bf16.mxu0 %v1677
        %1951 = vmatpush1.bf16.msra.mxu0 %v1676
        %1952 = vmatprep.subr.bf16.mxu0 %v1679
        %1953 = vmatpush1.bf16.msra.mxu0 %v1678
        %1954 = vmatprep.subr.bf16.mxu0 %v1681
        %1955 = vmatpush1.bf16.msra.mxu0 %v1680
        %1956 = vmatprep.subr.bf16.mxu0 %v1683
        %1957 = vmatpush1.bf16.msra.mxu0 %v1682
        %1958 = vmatprep.mubr.bf16.mxu0 %v1193
        %1959 = vmatmul.mubr.bf16.gmra.mrb[0].mxu0 %v1192
        %v1960 = vpop.f32.mrb[0].mxu0
        %v1961 = vadd.f32 %v1920, %v1960
        %v1962 = vpop.f32.mrb[0].mxu0
        %v1963 = vadd.f32 %v1922, %v1962
        %v1964 = vpop.f32.mrb[0].mxu0
        %v1965 = vpop.f32.mrb[0].mxu0
        %1966 = vdwg.mxu0
        %1967 = vmatprep.subr.bf16.mxu0 %v1685
        %1968 = vmatpush1.bf16.msra.mxu0 %v1684
        %1969 = vmatprep.subr.bf16.mxu0 %v1687
        %1970 = vmatpush1.bf16.msra.mxu0 %v1686
        %1971 = vmatprep.subr.bf16.mxu0 %v1689
        %1972 = vmatpush1.bf16.msra.mxu0 %v1688
        %1973 = vmatprep.subr.bf16.mxu0 %v1691
        %1974 = vmatpush1.bf16.msra.mxu0 %v1690
        %1975 = vmatprep.subr.bf16.mxu0 %v1693
        %1976 = vmatpush1.bf16.msra.mxu0 %v1692
        %1977 = vmatprep.subr.bf16.mxu0 %v1695
        %1978 = vmatpush1.bf16.msra.mxu0 %v1694
        %1979 = vmatprep.subr.bf16.mxu0 %v1697
        %1980 = vmatpush1.bf16.msra.mxu0 %v1696
        %1981 = vmatprep.subr.bf16.mxu0 %v1699
        %1982 = vmatpush1.bf16.msra.mxu0 %v1698
        %1983 = vmatprep.subr.bf16.mxu0 %v1701
        %1984 = vmatpush1.bf16.msra.mxu0 %v1700
        %1985 = vmatprep.subr.bf16.mxu0 %v1703
        %1986 = vmatpush1.bf16.msra.mxu0 %v1702
        %1987 = vmatprep.subr.bf16.mxu0 %v1705
        %1988 = vmatpush1.bf16.msra.mxu0 %v1704
        %1989 = vmatprep.subr.bf16.mxu0 %v1707
        %1990 = vmatpush1.bf16.msra.mxu0 %v1706
        %1991 = vmatprep.subr.bf16.mxu0 %v1709
        %1992 = vmatpush1.bf16.msra.mxu0 %v1708
        %1993 = vmatprep.subr.bf16.mxu0 %v1711
        %1994 = vmatpush1.bf16.msra.mxu0 %v1710
        %1995 = vmatprep.subr.bf16.mxu0 %v1713
        %1996 = vmatpush1.bf16.msra.mxu0 %v1712
        %1997 = vmatprep.subr.bf16.mxu0 %v1715
        %1998 = vmatpush1.bf16.msra.mxu0 %v1714
        %1999 = vmatprep.mubr.bf16.mxu0 %v1195
        %2000 = vmatmul.mubr.bf16.gmra.mrb[0].mxu0 %v1194
        %v2001 = vpop.f32.mrb[0].mxu0
        %v2002 = vadd.f32 %v1961, %v2001
        %v2003 = vpop.f32.mrb[0].mxu0
        %v2004 = vadd.f32 %v1963, %v2003
        %v2005 = vpop.f32.mrb[0].mxu0
        %v2006 = vpop.f32.mrb[0].mxu0
        %2007 = vdwg.mxu0
        %v2008 = vmax.f32 %v2002, 0.0
        %v2009 = vmax.f32 %v2004, 0.0
        %s2010 = smul.u32 %s30, 3
        %s2011 = sadd.s32 %s2010, %s31
        %s2012 = smul.u32 %s2011, 8
        %s2013 = sadd.s32 %s2012, 8
        %p2014 = scmp.gt.s32.totalorder %s2013, 20
        // Predicated region
        $region65: #{_trans_head_jit.1} parent=39 // pred_check
          %p2015 = pneg %p2014
        $region66: #{_trans_head_jit.1} parent=39 // pred_check_branch
          %2017 = sbr.rel (%p2015) target = $region68
        $region67: #{_trans_head_jit.1} parent=39 // pred_region
          %v2018 = vlaneseq
          %v2019 = vshrl.u32 %v2018, 7
          %v2020 = vstv %s2012
          %v2021 = vadd.s32 %v2020, %v2019
          %vm2022 = vcmp.lt.s32.totalorder %v2021, 20
          %v2023 = vsel %vm2022, 1, 0
          %vm2024 = vcmp.eq.s32.totalorder %v2023, 1
          %v2025 = vsel %vm2024, %v2008, 0.0
          %v2026 = vsel %vm2024, %v2009, 0.0
          %v2027 = vld [vmem:[%s322] sm:$0x3]
          %v2028 = vrot.slane %v2025, 4
          %v2029 = vmax.f32 %v2025, %v2028
          %v2030 = vrot.slane %v2029, 2
          %v2031 = vmax.f32 %v2029, %v2030
          %v2032 = vrot.slane %v2031, 1
          %v2033 = vmax.f32 %v2031, %v2032
          %v2034 = vrot.slane %v2026, 4
          %v2035 = vmax.f32 %v2026, %v2034
          %v2036 = vrot.slane %v2035, 2
          %v2037 = vmax.f32 %v2035, %v2036
          %v2038 = vrot.slane %v2037, 1
          %v2039 = vmax.f32 %v2037, %v2038
          %v2042 = vcombine.low %v2033, %v2039
          %v2044 = vunpack.c.l.s4 1966171168
          %v2045 = vunpack.c.0.s8 %v2044
          %v2046 = vlaneseq
          %v2047 = vshrl.u32 %v2046, 7
          %v2048 = vsub.s32 %v2045, %v2047
          %v2049 = vrot.slane %v2042, %v2048
          %v2051 = vunpack.c.l.s4 1966171168
          %v2052 = vunpack.c.0.s8 %v2051
          %v2053 = vlaneseq
          %v2054 = vshrl.u32 %v2053, 7
          %v2055 = vsub.s32 %v2052, %v2054
          %v2056 = vrot.slane %v2049, %v2055
          %v2058 = vmax.f32 %v2027, %v2056
          %v2059 = vlaneseq
          %vm2060 = vcmp.ge.s32.totalorder %v2059, 0
          %vm2061 = vcmp.lt.s32.totalorder %v2059, 256
          %vm2062 = vmand %vm2060, %vm2061
          %2063 = vst.msk [vmem:[%s322] sm:$0x3] %vm2062, %v2058
        $region68: #{_trans_head_jit.1} parent=39 // pred_fallthru
          _
        %p2064 = scmp.le.s32.totalorder %s2013, 20
        // Predicated region
        $region69: #{_trans_head_jit.1} parent=39 // pred_check
          %p2065 = pneg %p2064
        $region70: #{_trans_head_jit.1} parent=39 // pred_check_branch
          %2067 = sbr.rel (%p2065) target = $region72
        $region71: #{_trans_head_jit.1} parent=39 // pred_region
          %v2068 = vld [vmem:[%s322] sm:$0x3]
          %v2069 = vrot.slane %v2008, 4
          %v2070 = vmax.f32 %v2008, %v2069
          %v2071 = vrot.slane %v2070, 2
          %v2072 = vmax.f32 %v2070, %v2071
          %v2073 = vrot.slane %v2072, 1
          %v2074 = vmax.f32 %v2072, %v2073
          %v2075 = vrot.slane %v2009, 4
          %v2076 = vmax.f32 %v2009, %v2075
          %v2077 = vrot.slane %v2076, 2
          %v2078 = vmax.f32 %v2076, %v2077
          %v2079 = vrot.slane %v2078, 1
          %v2080 = vmax.f32 %v2078, %v2079
          %v2083 = vcombine.low %v2074, %v2080
          %v2085 = vunpack.c.l.s4 1966171168
          %v2086 = vunpack.c.0.s8 %v2085
          %v2087 = vlaneseq
          %v2088 = vshrl.u32 %v2087, 7
          %v2089 = vsub.s32 %v2086, %v2088
          %v2090 = vrot.slane %v2083, %v2089
          %v2092 = vunpack.c.l.s4 1966171168
          %v2093 = vunpack.c.0.s8 %v2092
          %v2094 = vlaneseq
          %v2095 = vshrl.u32 %v2094, 7
          %v2096 = vsub.s32 %v2093, %v2095
          %v2097 = vrot.slane %v2090, %v2096
          %v2099 = vmax.f32 %v2068, %v2097
          %v2100 = vlaneseq
          %vm2101 = vcmp.ge.s32.totalorder %v2100, 0
          %vm2102 = vcmp.lt.s32.totalorder %v2100, 256
          %vm2103 = vmand %vm2101, %vm2102
          %2104 = vst.msk [vmem:[%s322] sm:$0x3] %vm2103, %v2099
        $region72: #{_trans_head_jit.1} parent=39 // pred_fallthru
          _
        %s2105 = sand.u32 %s169, 1
        %s2106 = scalar_lea.sflag [#allocation4], %s2105
        %s2107 = sand.u32 %s169, 1
        %s2108 = smul.addr %s2107, 2
        %s2109 = scalar_lea.vmem [#allocation11], %s2108
        // Predicated region
        $region73: #{_trans_head_jit.1} parent=39 // pred_check
          %p2110 = pneg %p179
        $region74: #{_trans_head_jit.1} parent=39 // pred_check_branch
          %2112 = sbr.rel (%p2110) target = $region76
        $region75: #{_trans_head_jit.1} parent=39 // pred_region
          %s2114 = ssub.s32 32, 32
          %2115 = vsyncadd %s2106, %s2114
          %s2116 = smul.addr %s30, 2
          %s2117 = smul.addr %s29, 2
          %s2118 = sadd.s32 %s2116, %s2117
          %s2119 = smul.addr %s2118, 16
          %s2120 = scalar_lea.hbm %s5, %s2119
          %s2122 = sshll.u32 %s2109, 4
          %s2123 = int_to_ptr.vmem [resolvable:$true] %s2122
          %2125 = dma.vmem_to_hbm [thread:$0]  %s2123, 32, %s2120, %s2106
        $region76: #{_trans_head_jit.1} parent=39 // pred_fallthru
          _
      $region40: #{_trans_head_jit.1} parent=5 // pred_fallthru
        _
      %p2126 = scmp.le.s32.totalorder 2, %s19
      // Predicated region
      $region77: #{_trans_head_jit.1} parent=5 // pred_check
        %p2127 = pneg %p2126
      $region78: #{_trans_head_jit.1} parent=5 // pred_check_branch
        %2129 = sbr.rel (%p2127) target = $region80
      $region79: #{_trans_head_jit.1} parent=5 // pred_region
        %s2130 = ssub.s32 %s19, 2
        // Predicated region
        $region81: #{_trans_head_jit.1} parent=79 // pred_check
          %p2131 = pneg %p185
        $region82: #{_trans_head_jit.1} parent=79 // pred_check_branch
          %2133 = sbr.rel (%p2131) target = $region84
        $region83: #{_trans_head_jit.1} parent=79 // pred_region
          %s2134 = sand.u32 %s170, 1
          %s2135 = scalar_lea.sflag [#allocation4], %s2134
          %s2136 = sand.u32 %s170, 1
          %s2137 = smul.addr %s2136, 2
          %s2138 = scalar_lea.vmem [#allocation11], %s2137
          %2139 = dma.done %s2135, 32
        $region84: #{_trans_head_jit.1} parent=79 // pred_fallthru
          _
      $region80: #{_trans_head_jit.1} parent=5 // pred_fallthru
        _
    $region6: #{_trans_head_jit.1} parent=1 // loop_footer
      %s23 = sadd.s32 1, %s19
    $region7: #{_trans_head_jit.1} parent=1 // loop_footer_branch
      %18 = sbr.rel target = $region3
    $region8: #{_trans_head_jit.1} parent=1 // loop_exit
      _
    %2140 = vsyncpa [#allocation3], 1
    %s2141 = scalar_lea.sflag [#allocation3], 1
    %2142 = vsyncpa %s2141, 1
    %2143 = vsyncpa [#allocation6], 1
    %2144 = vsyncpa [#allocation9], 1
    %2145 = vsyncpa [#allocation4], 1
    %s2146 = scalar_lea.sflag [#allocation4], 1
    %2147 = vsyncpa %s2146, 1

</llo_original>
